<compile_context>
chip_gen: v7x
topology: tpu7x:2x2x1
jax: 0.10.0
libtpu: 0.0.40
codegen_flags: <defaults>
</compile_context>

<pallas_src>
import functools

import jax
import jax.numpy as jnp
from jax.experimental import pallas as pl
from jax.experimental.pallas import tpu as pltpu


# --------------------------- chip-aware config ----------------------------- #
def _tpu_vmem_capacity_bytes() -> int:
    """Physical VMEM per TensorCore (128 MiB on v5e/v6e, 64 MiB on v7x)."""
    try:
        return int(pltpu.get_tpu_info().vmem_capacity_bytes)
    except Exception:
        return 64 * 1024 * 1024          # conservative (v7x-sized) fallback


_VMEM_CAP = _tpu_vmem_capacity_bytes()
# Default scoped VMEM (16/32 MiB) is too small for double-buffered weight
# streams at real DeepSeek sizes; ask for ~80% of physical VMEM explicitly.
_VMEM_LIMIT = max(32 * 1024 * 1024, int(_VMEM_CAP * 0.8))
# th=512 double-buffered weight slabs fit 128 MiB VMEM (v5e/v6e) but not v7x's
# 64 MiB -> cap th at 256 there.
_TH_CAP = 512 if _VMEM_CAP >= 96 * 1024 * 1024 else 256
# Token-tile cap: 256 keeps the routed FFN near the HBM ridge on all gens
# without exploding the static worst-case padding (E * (tm - 1) ghost rows).
_TM_CAP = 256


# ------------------------------ helpers ------------------------------------ #
def _round_up(n: int, m: int) -> int:
    return ((n + m - 1) // m) * m


def _pick_divisor_tile(n, candidates=(512, 256, 128, 64, 32, 16, 8)):
    """Largest candidate tile that evenly divides n (None if none)."""
    for c in candidates:
        if n % c == 0:
            return c
    return None


def _choose_token_tile(n_routed: int, n_experts: int) -> int:
    """Token tile for the grouped FFN: ~n_routed/E rows, clamped to [8, _TM_CAP]."""
    t = ((n_routed // max(1, n_experts)) // 8) * 8
    return int(max(8, min(_TM_CAP, t)))


def _choose_hidden_tile(hidden: int) -> int:
    cands = tuple(c for c in (512, 256, 128) if c <= _TH_CAP)
    return _pick_divisor_tile(hidden, cands) or hidden


# ----------------------------- router kernel ------------------------------- #
def _router_kernel(x_ref, gw_ref, s_ref, *, n_valid):
    # logits = x @ gate_w^T (bf16 MXU, f32 accumulation); expert dim padded to
    # a full 128-lane block, padded lanes masked to -inf before softmax.
    logits = jnp.dot(x_ref[...], gw_ref[...], preferred_element_type=jnp.float32)
    lane = jax.lax.broadcasted_iota(jnp.int32, logits.shape, 1)
    logits = jnp.where(lane < n_valid, logits, -1e30)
    m = jnp.max(logits, axis=-1, keepdims=True)
    e = jnp.exp(logits - m)
    s_ref[...] = e / jnp.sum(e, axis=-1, keepdims=True)


def router_scores(x_bf16, gate_w_t, n_experts):
    T, D = x_bf16.shape
    Ep = _round_up(n_experts, 128)                        # lane-dense output
    gw = jnp.pad(gate_w_t, ((0, 0), (0, Ep - n_experts))).astype(jnp.bfloat16)
    tm = _pick_divisor_tile(T)
    Tp, xq = T, x_bf16
    if tm is None:                                        # pad tokens to 8-mult
        Tp = _round_up(T, 8)
        xq = jnp.pad(x_bf16, ((0, Tp - T), (0, 0)))
        tm = _pick_divisor_tile(Tp)
    out = pl.pallas_call(
        functools.partial(_router_kernel, n_valid=n_experts),
        out_shape=jax.ShapeDtypeStruct((Tp, Ep), jnp.float32),
        grid=(Tp // tm,),
        in_specs=[
            pl.BlockSpec((tm, D), lambda i: (i, 0)),
            pl.BlockSpec((D, Ep), lambda i: (0, 0)),
        ],
        out_specs=pl.BlockSpec((tm, Ep), lambda i: (i, 0)),
        compiler_params=pltpu.CompilerParams(dimension_semantics=("parallel",)),
    )(xq, gw)
    return out[:T, :n_experts]


# ------------------- grouped-expert FFN kernel (routed path) ---------------- #
def _grouped_ffn_kernel(tile_eid_ref, tile_valid_ref, x_ref, w1_ref, w3_ref,
                        w2_ref, o_ref, acc_ref):
    # tile_eid_ref (SMEM, scalar prefetch) already steered the weight DMAs via
    # the index_map; tile_valid_ref gates the compute for ghost padding tiles.
    t = pl.program_id(0)
    hi = pl.program_id(1)
    last = hi == pl.num_programs(1) - 1
    valid = tile_valid_ref[t] != 0

    @pl.when(valid)
    def _():
        x = x_ref[...]                                                   # (tm, D) bf16
        g = jnp.dot(x, w1_ref[0], preferred_element_type=jnp.float32)    # (tm, th)
        u = jnp.dot(x, w3_ref[0], preferred_element_type=jnp.float32)    # (tm, th)
        a = (g * jax.nn.sigmoid(g)) * u                                  # SiLU in f32
        partial = jnp.dot(a.astype(w2_ref.dtype), w2_ref[0],
                          preferred_element_type=jnp.float32)            # (tm, D)

        @pl.when(hi == 0)
        def _():
            acc_ref[...] = partial            # first step: skip zero-init + RMW

        @pl.when(hi > 0)
        def _():
            acc_ref[...] += partial

    @pl.when(last)
    def _():
        @pl.when(valid)
        def _():
            o_ref[...] = acc_ref[...].astype(o_ref.dtype)

        @pl.when(jnp.logical_not(valid))
        def _():
            o_ref[...] = jnp.zeros_like(o_ref)    # deterministic ghost-tile output


def grouped_experts(tile_eid, tile_valid, x_grouped, w1, w3, w2, *, tm, th,
                    out_dtype):
    """Per-expert-grouped FFN: rows of x_grouped are packed by expert with
    tile-aligned group starts; tile_eid[t] is the expert owning token tile t,
    tile_valid[t] is 0 for ghost (all-padding) tiles."""
    T_pad, D = x_grouped.shape
    _, _, H = w1.shape
    nt, nh = T_pad // tm, H // th
    # TODO(synk): at DeepSeek scale (dim~7k) also tile D, and on v7x switch the
    # token axis to pltpu.CORE_PARALLEL to shard tiles across both TensorCores.
    return pl.pallas_call(
        _grouped_ffn_kernel,
        out_shape=jax.ShapeDtypeStruct((T_pad, D), out_dtype),
        grid_spec=pltpu.PrefetchScalarGridSpec(
            num_scalar_prefetch=2,
            grid=(nt, nh),
            in_specs=[
                pl.BlockSpec((tm, D), lambda t, h, eid, vld: (t, 0)),          # x tile
                pl.BlockSpec((1, D, th), lambda t, h, eid, vld: (eid[t], 0, h)),  # w1
                pl.BlockSpec((1, D, th), lambda t, h, eid, vld: (eid[t], 0, h)),  # w3
                pl.BlockSpec((1, th, D), lambda t, h, eid, vld: (eid[t], h, 0)),  # w2
            ],
            out_specs=pl.BlockSpec((tm, D), lambda t, h, eid, vld: (t, 0)),
            scratch_shapes=[pltpu.VMEM((tm, D), jnp.float32)],
        ),
        compiler_params=pltpu.CompilerParams(
            dimension_semantics=("parallel", "arbitrary"),
            vmem_limit_bytes=_VMEM_LIMIT),
    )(tile_eid, tile_valid, x_grouped, w1, w3, w2)


# ----------------------- dense FFN kernel (shared expert) ------------------- #
def _dense_ffn_kernel(x_ref, w1_ref, w3_ref, w2_ref, o_ref, acc_ref):
    hi = pl.program_id(1)

    x = x_ref[...]
    g = jnp.dot(x, w1_ref[...], preferred_element_type=jnp.float32)
    u = jnp.dot(x, w3_ref[...], preferred_element_type=jnp.float32)
    a = (g * jax.nn.sigmoid(g)) * u
    partial = jnp.dot(a.astype(w2_ref.dtype), w2_ref[...],
                      preferred_element_type=jnp.float32)

    @pl.when(hi == 0)
    def _():
        acc_ref[...] = partial

    @pl.when(hi > 0)
    def _():
        acc_ref[...] += partial

    @pl.when(hi == pl.num_programs(1) - 1)
    def _():
        o_ref[...] = acc_ref[...].astype(o_ref.dtype)


def shared_expert_ffn(x_bf16, w1, w3, w2, out_dtype=jnp.float32):
    T, D = x_bf16.shape
    H = w1.shape[1]
    ts = _pick_divisor_tile(T)
    Tp, xq = T, x_bf16
    if ts is None:
        Tp = _round_up(T, 8)
        xq = jnp.pad(x_bf16, ((0, Tp - T), (0, 0)))
        ts = _pick_divisor_tile(Tp)
    th = _choose_hidden_tile(H)
    out = pl.pallas_call(
        _dense_ffn_kernel,
        out_shape=jax.ShapeDtypeStruct((Tp, D), out_dtype),
        grid=(Tp // ts, H // th),
        in_specs=[
            pl.BlockSpec((ts, D), lambda t, h: (t, 0)),
            pl.BlockSpec((D, th), lambda t, h: (0, h)),
            pl.BlockSpec((D, th), lambda t, h: (0, h)),
            pl.BlockSpec((th, D), lambda t, h: (h, 0)),
        ],
        out_specs=pl.BlockSpec((ts, D), lambda t, h: (t, 0)),
        scratch_shapes=[pltpu.VMEM((ts, D), jnp.float32)],
        compiler_params=pltpu.CompilerParams(
            dimension_semantics=("parallel", "arbitrary"),
            vmem_limit_bytes=_VMEM_LIMIT),
    )(xq, w1, w3, w2)
    return out[:T]


# ------------------------------- MoE forward -------------------------------- #
@functools.partial(jax.jit, static_argnames=("top_k", "route_scale"))
def moe_forward(x, params, *, top_k, route_scale):
    bs, slen, dim = x.shape
    T = bs * slen
    E, _, H = params["w1"].shape

    x2d = x.reshape(T, dim)
    x_bf16 = x2d.astype(jnp.bfloat16)

    # --- TokenChoiceTopKRouter (softmax scores; bias only biases selection) ---
    scores = router_scores(x_bf16, params["gate_w_t"], E)              # (T, E) f32
    biased = scores + params["expert_bias"][None, :]
    _, sel = jax.lax.top_k(biased, top_k)                              # (T, top_k)
    top_scores = jnp.take_along_axis(scores, sel, axis=1)              # unbiased scores

    sel_flat = sel.reshape(-1)
    counts = jnp.bincount(sel_flat, length=E)                          # histc
    sort_idx = jnp.argsort(sel_flat, stable=True)                      # stable argsort
    expert_ids_sorted = sel_flat[sort_idx].astype(jnp.int32)
    top_scores_sorted = top_scores.reshape(-1)[sort_idx] * route_scale
    token_idx = (sort_idx // top_k).astype(jnp.int32)

    # --- pack routed tokens into tile-aligned per-expert groups ---
    n_routed = T * top_k
    tm = _choose_token_tile(n_routed, E)
    T_pad = _round_up(n_routed + E * (tm - 1), tm)                     # static bound
    counts32 = counts.astype(jnp.int32)
    starts = jnp.cumsum(counts32) - counts32
    padded_counts = ((counts32 + tm - 1) // tm) * tm
    padded_starts = jnp.cumsum(padded_counts) - padded_counts
    pos_in_group = jnp.arange(n_routed, dtype=jnp.int32) - starts[expert_ids_sorted]
    dest = (padded_starts[expert_ids_sorted] + pos_in_group).astype(jnp.int32)

    # single-gather packing: slot -> source token index (sentinel row T = zeros)
    slot_src = jnp.full((T_pad,), T, dtype=jnp.int32).at[dest].set(token_idx)
    x_pad = jnp.concatenate([x_bf16, jnp.zeros((1, dim), jnp.bfloat16)], axis=0)
    x_grouped = jnp.take(x_pad, slot_src, axis=0)                      # (T_pad, dim)

    # per-token-tile expert id + nonempty flag (scalar prefetch for index_maps)
    num_tiles = T_pad // tm
    tile_idx = jnp.arange(num_tiles, dtype=jnp.int32)
    tile_starts = tile_idx * tm
    bounds = jnp.cumsum(padded_counts)
    n_valid_tiles = bounds[-1] // tm
    eid_raw = jnp.minimum(
        jnp.searchsorted(bounds, tile_starts, side="right"), E - 1).astype(jnp.int32)
    last_eid = eid_raw[jnp.maximum(n_valid_tiles - 1, 0)]
    # ghost tiles repeat the last valid tile's expert id so their weight DMAs
    # are elided (block index unchanged); their compute is skipped in-kernel.
    tile_eid = jnp.where(tile_idx < n_valid_tiles, eid_raw, last_eid).astype(jnp.int32)
    tile_valid = (tile_idx < n_valid_tiles).astype(jnp.int32)

    # --- routed experts: each grid step touches exactly one expert's weights ---
    th = _choose_hidden_tile(H)
    routed_pad = grouped_experts(
        tile_eid, tile_valid, x_grouped, params["w1"], params["w3"], params["w2"],
        tm=tm, th=th, out_dtype=jnp.bfloat16)                          # (T_pad, dim) bf16

    # --- shared expert: plain dense SwiGLU FFN over all tokens ---
    shared_out = shared_expert_ffn(
        x_bf16, params["sw1"], params["sw3"], params["sw2"],
        out_dtype=jnp.float32)                                         # (T, dim) f32

    # --- scale by routing scores and scatter-add straight from routed_pad ---
    # Pad/ghost rows carry slot_src == T (sentinel row, sliced off) and score 0.
    slot_score = jnp.zeros((T_pad,), jnp.float32).at[dest].set(top_scores_sorted)
    out_ext = jnp.concatenate([shared_out, jnp.zeros((1, dim), jnp.float32)], axis=0)
    out_ext = out_ext.at[slot_src].add(
        routed_pad.astype(jnp.float32) * slot_score[:, None])
    out = out_ext[:T]
    return out.reshape(bs, slen, dim).astype(x.dtype), counts.astype(jnp.float32)


# --------------------------------- driver ----------------------------------- #
if __name__ == "__main__":
    # Small DeepSeekV3-like config
    bs, slen = 2, 16
    dim = 64
    moe_inter_dim = 32
    n_routed_experts = 8
    n_activated_experts = 2        # top_k
    n_shared_experts = 2
    route_scale = 1.0

    key = jax.random.PRNGKey(0)
    ks = jax.random.split(key, 8)
    init_std = 0.02
    shared_hidden = moe_inter_dim * n_shared_experts

    params = {
        # gate: nn.Linear(dim, E, bias=False) -> weight (E, dim); stored transposed
        "gate_w_t": jax.random.normal(ks[0], (dim, n_routed_experts), jnp.float32) * init_std,
        # routed-expert weights in bf16 (matches torch._grouped_mm bf16 path)
        "w1": (jax.random.normal(ks[1], (n_routed_experts, dim, moe_inter_dim), jnp.float32)
               * init_std).astype(jnp.bfloat16),
        "w2": (jax.random.normal(ks[2], (n_routed_experts, moe_inter_dim, dim), jnp.float32)
               * init_std).astype(jnp.bfloat16),
        "w3": (jax.random.normal(ks[3], (n_routed_experts, dim, moe_inter_dim), jnp.float32)
               * init_std).astype(jnp.bfloat16),
        # shared expert (single expert, hidden = moe_inter_dim * n_shared_experts)
        "sw1": (jax.random.normal(ks[4], (dim, shared_hidden), jnp.float32)
                * init_std).astype(jnp.bfloat16),
        "sw2": (jax.random.normal(ks[5], (shared_hidden, dim), jnp.float32)
                * init_std).astype(jnp.bfloat16),
        "sw3": (jax.random.normal(ks[6], (dim, shared_hidden), jnp.float32)
                * init_std).astype(jnp.bfloat16),
        "expert_bias": jnp.zeros((n_routed_experts,), jnp.float32),
    }

    x = jax.random.normal(ks[7], (bs, slen, dim), jnp.float32)

    out, tokens_per_expert = moe_forward(
        x, params, top_k=n_activated_experts, route_scale=route_scale)
    jax.block_until_ready(out)
    jax.block_until_ready(tokens_per_expert)

    assert out.shape == (bs, slen, dim)
    assert tokens_per_expert.shape == (n_routed_experts,)
    print("KERNEL_OK")
</pallas_src>

<mosaic_0001>
module attributes {stable_mosaic.version = 11 : i64} {
  func.func private @main(%arg0: i32) attributes {dimension_semantics = [#tpu.dimension_semantics<core_parallel>], iteration_bounds = array<i64: 2>, tpu.core_type = #tpu.core_type<sc_scalar_subcore>, window_params = []} {
    return
  }
}

module attributes {stable_mosaic.version = 11 : i64} {
  func.func private @main(%arg0: i32) attributes {dimension_semantics = [#tpu.dimension_semantics<core_parallel>], iteration_bounds = array<i64: 2>, tpu.core_type = #tpu.core_type<sc_scalar_subcore>, window_params = []} {
    return
  }
}

module attributes {stable_mosaic.version = 11 : i64} {
  func.func @_router_kernel(%arg0: i32, %arg1: memref<32x64xbf16, #tpu.memory_space<vmem>>, %arg2: memref<64x128xbf16, #tpu.memory_space<vmem>>, %arg3: memref<32x128xf32, #tpu.memory_space<vmem>>) attributes {dimension_semantics = [#tpu.dimension_semantics<parallel>], iteration_bounds = array<i64: 1>, scalar_prefetch = 0 : i64, scratch_operands = 0 : i64, tpu.core_type = #tpu.core_type<tc>, window_params = [{transform_indices = @transform_0, window_bounds = array<i64: 32, 64>}, {pipeline_mode = #tpu.pipeline_mode<synchronous>, transform_indices = @transform_1, window_bounds = array<i64: 64, 128>}, {transform_indices = @transform_2, window_bounds = array<i64: 32, 128>}]} {
    %c0 = arith.constant 0 : index
    %c0_0 = arith.constant 0 : index
    %0 = vector.load %arg1[%c0, %c0_0] : memref<32x64xbf16, #tpu.memory_space<vmem>>, vector<32x64xbf16>
    %c0_1 = arith.constant 0 : index
    %c0_2 = arith.constant 0 : index
    %1 = vector.load %arg2[%c0_1, %c0_2] : memref<64x128xbf16, #tpu.memory_space<vmem>>, vector<64x128xbf16>
    %cst = arith.constant dense<0.000000e+00> : vector<32x128xf32>
    %2 = tpu.matmul %0, %1, %cst {dimension_numbers = #tpu.dot_dimension_numbers<[1], [0], [0], [1], [0, 0, 1, 1], [], []>} : vector<32x64xbf16>, vector<64x128xbf16>, vector<32x128xf32> -> vector<32x128xf32>
    %3 = tpu.iota {dimensions = array<i32: 1>} : vector<32x128xi32>
    %c8_i32 = arith.constant 8 : i32
    %4 = vector.broadcast %c8_i32 : i32 to vector<32x128xi32>
    %5 = arith.cmpi slt, %3, %4 : vector<32x128xi32>
    %cst_3 = arith.constant -1.000000e+30 : f32
    %6 = vector.broadcast %cst_3 : f32 to vector<32x128xf32>
    %7 = arith.select %5, %2, %6 : vector<32x128xi1>, vector<32x128xf32>
    %cst_4 = arith.constant dense<0xFF800000> : vector<32xf32>
    %8 = vector.multi_reduction <maximumf>, %7, %cst_4 [1] : vector<32x128xf32> to vector<32xf32>
    %9 = vector.shape_cast %8 : vector<32xf32> to vector<32x1xf32>
    %10 = vector.broadcast %9 : vector<32x1xf32> to vector<32x128xf32>
    %11 = arith.subf %7, %10 : vector<32x128xf32>
    %12 = math.exp %11 : vector<32x128xf32>
    %cst_5 = arith.constant dense<0.000000e+00> : vector<32xf32>
    %13 = vector.multi_reduction <add>, %12, %cst_5 [1] : vector<32x128xf32> to vector<32xf32>
    %14 = vector.shape_cast %13 : vector<32xf32> to vector<32x1xf32>
    %15 = vector.broadcast %14 : vector<32x1xf32> to vector<32x128xf32>
    %16 = arith.divf %12, %15 : vector<32x128xf32>
    %c0_6 = arith.constant 0 : index
    %c0_7 = arith.constant 0 : index
    %17 = vector.load %arg3[%c0_6, %c0_7] : memref<32x128xf32, #tpu.memory_space<vmem>>, vector<32x128xf32>
    tpu.vector_store %arg3[%c0_6, %c0_7], %16 {strides = array<i32>} : memref<32x128xf32, #tpu.memory_space<vmem>>, vector<32x128xf32>,
    return
  }
  func.func @transform_0(%arg0: i32) -> (i32, i32) {
    %c0_i32 = arith.constant 0 : i32
    %c0_i32_0 = arith.constant 0 : i32
    return %arg0, %c0_i32 : i32, i32
  }
  func.func @transform_1(%arg0: i32) -> (i32, i32) {
    %c0_i32 = arith.constant 0 : i32
    %c0_i32_0 = arith.constant 0 : i32
    %c0_i32_1 = arith.constant 0 : i32
    return %c0_i32, %c0_i32_0 : i32, i32
  }
  func.func @transform_2(%arg0: i32) -> (i32, i32) {
    %c0_i32 = arith.constant 0 : i32
    %c0_i32_0 = arith.constant 0 : i32
    return %arg0, %c0_i32 : i32, i32
  }
}

module attributes {stable_mosaic.version = 11 : i64} {
  func.func @_dense_ffn_kernel(%arg0: i32, %arg1: i32, %arg2: memref<32x64xbf16, #tpu.memory_space<vmem>>, %arg3: memref<64x64xbf16, #tpu.memory_space<vmem>>, %arg4: memref<64x64xbf16, #tpu.memory_space<vmem>>, %arg5: memref<64x64xbf16, #tpu.memory_space<vmem>>, %arg6: memref<32x64xf32, #tpu.memory_space<vmem>>, %arg7: memref<32x64xf32, #tpu.memory_space<vmem>>) attributes {dimension_semantics = [#tpu.dimension_semantics<parallel>, #tpu.dimension_semantics<arbitrary>], iteration_bounds = array<i64: 1, 1>, scalar_prefetch = 0 : i64, scratch_operands = 1 : i64, tpu.core_type = #tpu.core_type<tc>, window_params = [{transform_indices = @transform_0, window_bounds = array<i64: 32, 64>}, {transform_indices = @transform_1, window_bounds = array<i64: 64, 64>}, {transform_indices = @transform_2, window_bounds = array<i64: 64, 64>}, {transform_indices = @transform_3, window_bounds = array<i64: 64, 64>}, {transform_indices = @transform_4, window_bounds = array<i64: 32, 64>}]} {
    %c0 = arith.constant 0 : index
    %c0_0 = arith.constant 0 : index
    %0 = vector.load %arg2[%c0, %c0_0] : memref<32x64xbf16, #tpu.memory_space<vmem>>, vector<32x64xbf16>
    %c0_1 = arith.constant 0 : index
    %c0_2 = arith.constant 0 : index
    %1 = vector.load %arg3[%c0_1, %c0_2] : memref<64x64xbf16, #tpu.memory_space<vmem>>, vector<64x64xbf16>
    %cst = arith.constant dense<0.000000e+00> : vector<32x64xf32>
    %2 = tpu.matmul %0, %1, %cst {dimension_numbers = #tpu.dot_dimension_numbers<[1], [0], [0], [1], [0, 0, 1, 1], [], []>} : vector<32x64xbf16>, vector<64x64xbf16>, vector<32x64xf32> -> vector<32x64xf32>
    %c0_3 = arith.constant 0 : index
    %c0_4 = arith.constant 0 : index
    %3 = vector.load %arg4[%c0_3, %c0_4] : memref<64x64xbf16, #tpu.memory_space<vmem>>, vector<64x64xbf16>
    %cst_5 = arith.constant dense<0.000000e+00> : vector<32x64xf32>
    %4 = tpu.matmul %0, %3, %cst_5 {dimension_numbers = #tpu.dot_dimension_numbers<[1], [0], [0], [1], [0, 0, 1, 1], [], []>} : vector<32x64xbf16>, vector<64x64xbf16>, vector<32x64xf32> -> vector<32x64xf32>
    %5 = arith.negf %2 : vector<32x64xf32>
    %6 = math.exp %5 : vector<32x64xf32>
    %cst_6 = arith.constant 1.000000e+00 : f32
    %7 = vector.broadcast %cst_6 : f32 to vector<32x64xf32>
    %8 = arith.addf %7, %6 : vector<32x64xf32>
    %9 = arith.divf %7, %8 : vector<32x64xf32>
    %10 = arith.mulf %2, %9 : vector<32x64xf32>
    %11 = arith.mulf %10, %4 : vector<32x64xf32>
    %12 = arith.truncf %11 : vector<32x64xf32> to vector<32x64xbf16>
    %c0_7 = arith.constant 0 : index
    %c0_8 = arith.constant 0 : index
    %13 = vector.load %arg5[%c0_7, %c0_8] : memref<64x64xbf16, #tpu.memory_space<vmem>>, vector<64x64xbf16>
    %cst_9 = arith.constant dense<0.000000e+00> : vector<32x64xf32>
    %14 = tpu.matmul %12, %13, %cst_9 {dimension_numbers = #tpu.dot_dimension_numbers<[1], [0], [0], [1], [0, 0, 1, 1], [], []>} : vector<32x64xbf16>, vector<64x64xbf16>, vector<32x64xf32> -> vector<32x64xf32>
    %c0_i32 = arith.constant 0 : i32
    %15 = arith.cmpi eq, %arg1, %c0_i32 : i32
    %16 = arith.extui %15 : i1 to i32
    %c0_i32_10 = arith.constant 0 : i32
    %17 = arith.cmpi ne, %16, %c0_i32_10 : i32
    scf.if %17 {
      %c0_15 = arith.constant 0 : index
      %c0_16 = arith.constant 0 : index
      %24 = vector.load %arg7[%c0_15, %c0_16] : memref<32x64xf32, #tpu.memory_space<vmem>>, vector<32x64xf32>
      tpu.vector_store %arg7[%c0_15, %c0_16], %14 {strides = array<i32>} : memref<32x64xf32, #tpu.memory_space<vmem>>, vector<32x64xf32>,
    } else {
    }
    %c0_i32_11 = arith.constant 0 : i32
    %18 = arith.cmpi sgt, %arg1, %c0_i32_11 : i32
    %19 = arith.extui %18 : i1 to i32
    %c0_i32_12 = arith.constant 0 : i32
    %20 = arith.cmpi ne, %19, %c0_i32_12 : i32
    scf.if %20 {
      %c0_15 = arith.constant 0 : index
      %c0_16 = arith.constant 0 : index
      %24 = vector.load %arg7[%c0_15, %c0_16] : memref<32x64xf32, #tpu.memory_space<vmem>>, vector<32x64xf32>
      %25 = arith.addf %24, %14 : vector<32x64xf32>
      %c0_17 = arith.constant 0 : index
      %c0_18 = arith.constant 0 : index
      %26 = vector.load %arg7[%c0_17, %c0_18] : memref<32x64xf32, #tpu.memory_space<vmem>>, vector<32x64xf32>
      tpu.vector_store %arg7[%c0_17, %c0_18], %25 {strides = array<i32>} : memref<32x64xf32, #tpu.memory_space<vmem>>, vector<32x64xf32>,
    } else {
    }
    %c0_i32_13 = arith.constant 0 : i32
    %21 = arith.cmpi eq, %arg1, %c0_i32_13 : i32
    %22 = arith.extui %21 : i1 to i32
    %c0_i32_14 = arith.constant 0 : i32
    %23 = arith.cmpi ne, %22, %c0_i32_14 : i32
    scf.if %23 {
      %c0_15 = arith.constant 0 : index
      %c0_16 = arith.constant 0 : index
      %24 = vector.load %arg7[%c0_15, %c0_16] : memref<32x64xf32, #tpu.memory_space<vmem>>, vector<32x64xf32>
      %c0_17 = arith.constant 0 : index
      %c0_18 = arith.constant 0 : index
      %25 = vector.load %arg6[%c0_17, %c0_18] : memref<32x64xf32, #tpu.memory_space<vmem>>, vector<32x64xf32>
      tpu.vector_store %arg6[%c0_17, %c0_18], %24 {strides = array<i32>} : memref<32x64xf32, #tpu.memory_space<vmem>>, vector<32x64xf32>,
    } else {
    }
    return
  }
  func.func @transform_0(%arg0: i32, %arg1: i32) -> (i32, i32) {
    %c0_i32 = arith.constant 0 : i32
    %c0_i32_0 = arith.constant 0 : i32
    return %arg0, %c0_i32 : i32, i32
  }
  func.func @transform_1(%arg0: i32, %arg1: i32) -> (i32, i32) {
    %c0_i32 = arith.constant 0 : i32
    %c0_i32_0 = arith.constant 0 : i32
    return %c0_i32, %arg1 : i32, i32
  }
  func.func @transform_2(%arg0: i32, %arg1: i32) -> (i32, i32) {
    %c0_i32 = arith.constant 0 : i32
    %c0_i32_0 = arith.constant 0 : i32
    return %c0_i32, %arg1 : i32, i32
  }
  func.func @transform_3(%arg0: i32, %arg1: i32) -> (i32, i32) {
    %c0_i32 = arith.constant 0 : i32
    %c0_i32_0 = arith.constant 0 : i32
    return %arg1, %c0_i32 : i32, i32
  }
  func.func @transform_4(%arg0: i32, %arg1: i32) -> (i32, i32) {
    %c0_i32 = arith.constant 0 : i32
    %c0_i32_0 = arith.constant 0 : i32
    return %arg0, %c0_i32 : i32, i32
  }
}

module attributes {stable_mosaic.version = 11 : i64} {
  func.func @_grouped_ffn_kernel(%arg0: i32, %arg1: i32, %arg2: memref<15xi32, #tpu.memory_space<smem>>, %arg3: memref<15xi32, #tpu.memory_space<smem>>, %arg4: memref<8x64xbf16, #tpu.memory_space<vmem>>, %arg5: memref<1x64x32xbf16, #tpu.memory_space<vmem>>, %arg6: memref<1x64x32xbf16, #tpu.memory_space<vmem>>, %arg7: memref<1x32x64xbf16, #tpu.memory_space<vmem>>, %arg8: memref<8x64xbf16, #tpu.memory_space<vmem>>, %arg9: memref<8x64xf32, #tpu.memory_space<vmem>>) attributes {dimension_semantics = [#tpu.dimension_semantics<parallel>, #tpu.dimension_semantics<arbitrary>], iteration_bounds = array<i64: 15, 1>, scalar_prefetch = 2 : i64, scratch_operands = 1 : i64, tpu.core_type = #tpu.core_type<tc>, window_params = [{transform_indices = @transform_0, window_bounds = array<i64: 8, 64>}, {transform_indices = @transform_1, window_bounds = array<i64: 1, 64, 32>}, {transform_indices = @transform_2, window_bounds = array<i64: 1, 64, 32>}, {transform_indices = @transform_3, window_bounds = array<i64: 1, 32, 64>}, {transform_indices = @transform_4, window_bounds = array<i64: 8, 64>}]} {
    %c0_i32 = arith.constant 0 : i32
    %0 = arith.cmpi eq, %arg1, %c0_i32 : i32
    %1 = arith.index_cast %arg0 : i32 to index
    %2 = memref.load %arg3[%1] : memref<15xi32, #tpu.memory_space<smem>>
    %c0_i32_0 = arith.constant 0 : i32
    %3 = arith.cmpi ne, %2, %c0_i32_0 : i32
    %4 = arith.extui %3 : i1 to i32
    %c0_i32_1 = arith.constant 0 : i32
    %5 = arith.cmpi ne, %4, %c0_i32_1 : i32
    scf.if %5 {
      %c0 = arith.constant 0 : index
      %c0_3 = arith.constant 0 : index
      %8 = vector.load %arg4[%c0, %c0_3] : memref<8x64xbf16, #tpu.memory_space<vmem>>, vector<8x64xbf16>
      %c0_4 = arith.constant 0 : index
      %c0_5 = arith.constant 0 : index
      %c0_6 = arith.constant 0 : index
      %9 = vector.load %arg5[%c0_4, %c0_5, %c0_6] : memref<1x64x32xbf16, #tpu.memory_space<vmem>>, vector<1x64x32xbf16>
      %10 = vector.shape_cast %9 : vector<1x64x32xbf16> to vector<64x32xbf16>
      %cst = arith.constant dense<0.000000e+00> : vector<8x32xf32>
      %11 = tpu.matmul %8, %10, %cst {dimension_numbers = #tpu.dot_dimension_numbers<[1], [0], [0], [1], [0, 0, 1, 1], [], []>} : vector<8x64xbf16>, vector<64x32xbf16>, vector<8x32xf32> -> vector<8x32xf32>
      %c0_7 = arith.constant 0 : index
      %c0_8 = arith.constant 0 : index
      %c0_9 = arith.constant 0 : index
      %12 = vector.load %arg6[%c0_7, %c0_8, %c0_9] : memref<1x64x32xbf16, #tpu.memory_space<vmem>>, vector<1x64x32xbf16>
      %13 = vector.shape_cast %12 : vector<1x64x32xbf16> to vector<64x32xbf16>
      %cst_10 = arith.constant dense<0.000000e+00> : vector<8x32xf32>
      %14 = tpu.matmul %8, %13, %cst_10 {dimension_numbers = #tpu.dot_dimension_numbers<[1], [0], [0], [1], [0, 0, 1, 1], [], []>} : vector<8x64xbf16>, vector<64x32xbf16>, vector<8x32xf32> -> vector<8x32xf32>
      %15 = arith.negf %11 : vector<8x32xf32>
      %16 = math.exp %15 : vector<8x32xf32>
      %cst_11 = arith.constant 1.000000e+00 : f32
      %17 = vector.broadcast %cst_11 : f32 to vector<8x32xf32>
      %18 = arith.addf %17, %16 : vector<8x32xf32>
      %19 = arith.divf %17, %18 : vector<8x32xf32>
      %20 = arith.mulf %11, %19 : vector<8x32xf32>
      %21 = arith.mulf %20, %14 : vector<8x32xf32>
      %22 = arith.truncf %21 : vector<8x32xf32> to vector<8x32xbf16>
      %c0_12 = arith.constant 0 : index
      %c0_13 = arith.constant 0 : index
      %c0_14 = arith.constant 0 : index
      %23 = vector.load %arg7[%c0_12, %c0_13, %c0_14] : memref<1x32x64xbf16, #tpu.memory_space<vmem>>, vector<1x32x64xbf16>
      %24 = vector.shape_cast %23 : vector<1x32x64xbf16> to vector<32x64xbf16>
      %cst_15 = arith.constant dense<0.000000e+00> : vector<8x64xf32>
      %25 = tpu.matmul %22, %24, %cst_15 {dimension_numbers = #tpu.dot_dimension_numbers<[1], [0], [0], [1], [0, 0, 1, 1], [], []>} : vector<8x32xbf16>, vector<32x64xbf16>, vector<8x64xf32> -> vector<8x64xf32>
      %c0_i32_16 = arith.constant 0 : i32
      %26 = arith.cmpi eq, %arg1, %c0_i32_16 : i32
      %27 = arith.extui %26 : i1 to i32
      %c0_i32_17 = arith.constant 0 : i32
      %28 = arith.cmpi ne, %27, %c0_i32_17 : i32
      scf.if %28 {
        %c0_20 = arith.constant 0 : index
        %c0_21 = arith.constant 0 : index
        %32 = vector.load %arg9[%c0_20, %c0_21] : memref<8x64xf32, #tpu.memory_space<vmem>>, vector<8x64xf32>
        tpu.vector_store %arg9[%c0_20, %c0_21], %25 {strides = array<i32>} : memref<8x64xf32, #tpu.memory_space<vmem>>, vector<8x64xf32>,
      } else {
      }
      %c0_i32_18 = arith.constant 0 : i32
      %29 = arith.cmpi sgt, %arg1, %c0_i32_18 : i32
      %30 = arith.extui %29 : i1 to i32
      %c0_i32_19 = arith.constant 0 : i32
      %31 = arith.cmpi ne, %30, %c0_i32_19 : i32
      scf.if %31 {
        %c0_20 = arith.constant 0 : index
        %c0_21 = arith.constant 0 : index
        %32 = vector.load %arg9[%c0_20, %c0_21] : memref<8x64xf32, #tpu.memory_space<vmem>>, vector<8x64xf32>
        %33 = arith.addf %32, %25 : vector<8x64xf32>
        %c0_22 = arith.constant 0 : index
        %c0_23 = arith.constant 0 : index
        %34 = vector.load %arg9[%c0_22, %c0_23] : memref<8x64xf32, #tpu.memory_space<vmem>>, vector<8x64xf32>
        tpu.vector_store %arg9[%c0_22, %c0_23], %33 {strides = array<i32>} : memref<8x64xf32, #tpu.memory_space<vmem>>, vector<8x64xf32>,
      } else {
      }
    } else {
    }
    %6 = arith.extui %0 : i1 to i32
    %c0_i32_2 = arith.constant 0 : i32
    %7 = arith.cmpi ne, %6, %c0_i32_2 : i32
    scf.if %7 {
      %8 = arith.extui %3 : i1 to i32
      %c0_i32_3 = arith.constant 0 : i32
      %9 = arith.cmpi ne, %8, %c0_i32_3 : i32
      scf.if %9 {
        %c0 = arith.constant 0 : index
        %c0_5 = arith.constant 0 : index
        %13 = vector.load %arg9[%c0, %c0_5] : memref<8x64xf32, #tpu.memory_space<vmem>>, vector<8x64xf32>
        %14 = arith.truncf %13 : vector<8x64xf32> to vector<8x64xbf16>
        %c0_6 = arith.constant 0 : index
        %c0_7 = arith.constant 0 : index
        %15 = vector.load %arg8[%c0_6, %c0_7] : memref<8x64xbf16, #tpu.memory_space<vmem>>, vector<8x64xbf16>
        tpu.vector_store %arg8[%c0_6, %c0_7], %14 {strides = array<i32>} : memref<8x64xbf16, #tpu.memory_space<vmem>>, vector<8x64xbf16>,
      } else {
      }
      %true = arith.constant true
      %10 = arith.xori %3, %true : i1
      %11 = arith.extui %10 : i1 to i32
      %c0_i32_4 = arith.constant 0 : i32
      %12 = arith.cmpi ne, %11, %c0_i32_4 : i32
      scf.if %12 {
        %cst = arith.constant 0.000000e+00 : bf16
        %13 = vector.broadcast %cst : bf16 to vector<8x64xbf16>
        %c0 = arith.constant 0 : index
        %c0_5 = arith.constant 0 : index
        %14 = vector.load %arg8[%c0, %c0_5] : memref<8x64xbf16, #tpu.memory_space<vmem>>, vector<8x64xbf16>
        tpu.vector_store %arg8[%c0, %c0_5], %13 {strides = array<i32>} : memref<8x64xbf16, #tpu.memory_space<vmem>>, vector<8x64xbf16>,
      } else {
      }
    } else {
    }
    return
  }
  func.func @transform_0(%arg0: i32, %arg1: i32, %arg2: memref<15xi32, #tpu.memory_space<smem>>, %arg3: memref<15xi32, #tpu.memory_space<smem>>) -> (i32, i32) {
    %c0_i32 = arith.constant 0 : i32
    %c0_i32_0 = arith.constant 0 : i32
    return %arg0, %c0_i32 : i32, i32
  }
  func.func @transform_1(%arg0: i32, %arg1: i32, %arg2: memref<15xi32, #tpu.memory_space<smem>>, %arg3: memref<15xi32, #tpu.memory_space<smem>>) -> (i32, i32, i32) {
    %0 = arith.index_cast %arg0 : i32 to index
    %1 = memref.load %arg2[%0] : memref<15xi32, #tpu.memory_space<smem>>
    %c0_i32 = arith.constant 0 : i32
    %c0_i32_0 = arith.constant 0 : i32
    return %1, %c0_i32, %arg1 : i32, i32, i32
  }
  func.func @transform_2(%arg0: i32, %arg1: i32, %arg2: memref<15xi32, #tpu.memory_space<smem>>, %arg3: memref<15xi32, #tpu.memory_space<smem>>) -> (i32, i32, i32) {
    %0 = arith.index_cast %arg0 : i32 to index
    %1 = memref.load %arg2[%0] : memref<15xi32, #tpu.memory_space<smem>>
    %c0_i32 = arith.constant 0 : i32
    %c0_i32_0 = arith.constant 0 : i32
    return %1, %c0_i32, %arg1 : i32, i32, i32
  }
  func.func @transform_3(%arg0: i32, %arg1: i32, %arg2: memref<15xi32, #tpu.memory_space<smem>>, %arg3: memref<15xi32, #tpu.memory_space<smem>>) -> (i32, i32, i32) {
    %0 = arith.index_cast %arg0 : i32 to index
    %1 = memref.load %arg2[%0] : memref<15xi32, #tpu.memory_space<smem>>
    %c0_i32 = arith.constant 0 : i32
    %c0_i32_0 = arith.constant 0 : i32
    return %1, %arg1, %c0_i32 : i32, i32, i32
  }
  func.func @transform_4(%arg0: i32, %arg1: i32, %arg2: memref<15xi32, #tpu.memory_space<smem>>, %arg3: memref<15xi32, #tpu.memory_space<smem>>) -> (i32, i32) {
    %c0_i32 = arith.constant 0 : i32
    %c0_i32_0 = arith.constant 0 : i32
    return %arg0, %c0_i32 : i32, i32
  }
}

</mosaic_0001>

<llo_original>
// kernel: custom-call.2
$region0: #{custom-call.2}
  %s0 = inlined_call_operand.vmem [shape: u32[15], index: 0, kind: output, shape index: {}]

// kernel: moe_forward.3
$region0: #{moe_forward.3}
  #allocation0 [shape = 'u32[]', space=smem, size = 0x4, offset = 0x4, fixed_abs, tag = 'smem constant byte address 0x4 - core index']
  #allocation1 [shape = 'u32[144,128]{1,0:T(1,128)}', space=vmem, size = 0x12000, scoped, tag = 'internal scratch']
  %s0 = inlined_call_operand.vmem [shape: bf16[32,64], index: 0, kind: input, shape index: {}]
  %s1 = inlined_call_operand.vmem [shape: bf16[64,128], index: 1, kind: input, shape index: {}]
  %s2 = inlined_call_operand.vmem [shape: f32[32,128], index: 2, kind: output, shape index: {}]
  %s3 = sld [smem:[#allocation0]]
  $region18: #{moe_forward.3} parent=0
    _
  %s5 = ssub.s32 1, %s3
  %s6 = scalar_select 0, %s5, %s3
  // Predicated region
  $region2: #{moe_forward.3} parent=0 // pred_check
    _
  $region3: #{moe_forward.3} parent=0 // pred_check_branch
    %8 = sbr.rel (0) target = $region5
  $region4: #{moe_forward.3} parent=0 // pred_region
    _
  $region5: #{moe_forward.3} parent=0 // pred_fallthru
    _
  // Predicated region
  $region6: #{moe_forward.3} parent=0 // pred_check
    _
  $region7: #{moe_forward.3} parent=0 // pred_check_branch
    %10 = sbr.rel (0) target = $region9
  $region8: #{moe_forward.3} parent=0 // pred_region
    _
  $region9: #{moe_forward.3} parent=0 // pred_fallthru
    _
  %v12 = vld [vmem:[%s0] sm:$0xf]
  %v13 = vld [vmem:[%s0 + $0x4] sm:$0xf]
  %v14 = vld [vmem:[%s0 + $0x8] sm:$0xf]
  %v15 = vld [vmem:[%s0 + $0xc] sm:$0xf]
  %v16 = vld [vmem:[%s1] sm:$0xf]
  %v17 = vld [vmem:[%s1 + $0x4] sm:$0xf]
  %v18 = vld [vmem:[%s1 + $0x8] sm:$0xf]
  %v19 = vld [vmem:[%s1 + $0xc] sm:$0xf]
  %v20 = vld [vmem:[%s1 + $0x10] sm:$0xf]
  %v21 = vld [vmem:[%s1 + $0x14] sm:$0xf]
  %v22 = vld [vmem:[%s1 + $0x18] sm:$0xf]
  %v23 = vld [vmem:[%s1 + $0x1c] sm:$0xf]
  %v28 = vunpack.c.l.b16 %v12
  %v29 = vunpack.c.l.b16 %v13
  %v30 = vunpack.c.l.b16 %v14
  %v31 = vunpack.c.l.b16 %v15
  %v32 = vpack.c.b16 %v29, %v28
  %v33 = vpack.c.b16 %v31, %v30
  %v42 = vunpack.c.l.b16 %v16
  %v43 = vunpack.c.l.b16 %v17
  %v44 = vunpack.c.l.b16 %v18
  %v45 = vunpack.c.l.b16 %v19
  %v46 = vunpack.c.l.b16 %v20
  %v47 = vunpack.c.l.b16 %v21
  %v48 = vunpack.c.l.b16 %v22
  %v49 = vunpack.c.l.b16 %v23
  %v50 = vpack.c.b16 %v43, %v42
  %v51 = vpack.c.b16 %v45, %v44
  %v52 = vpack.c.b16 %v47, %v46
  %v53 = vpack.c.b16 %v49, %v48
  %vm58 = vcmask 523264
  %v60 = vsel %vm58, %v32, 0
  %v63 = vsel %vm58, %v33, 0
  %65 = vmatprep.subr.bf16.mxu0 0
  %66 = vmatpush1.bf16.msra.mxu0 %v50
  %67 = vmatprep.subr.bf16.mxu0 0
  %68 = vmatpush1.bf16.msra.mxu0 %v51
  %69 = vmatprep.subr.bf16.mxu0 0
  %70 = vmatpush1.bf16.msra.mxu0 %v52
  %71 = vmatprep.subr.bf16.mxu0 0
  %72 = vmatpush1.bf16.msra.mxu0 %v53
  %73 = vmatprep.subr.bf16.mxu0 0
  %74 = vmatpush1.bf16.msra.mxu0 0
  %75 = vmatprep.subr.bf16.mxu0 0
  %76 = vmatpush1.bf16.msra.mxu0 0
  %77 = vmatprep.subr.bf16.mxu0 0
  %78 = vmatpush1.bf16.msra.mxu0 0
  %79 = vmatprep.subr.bf16.mxu0 0
  %80 = vmatpush1.bf16.msra.mxu0 0
  %81 = vmatprep.subr.bf16.mxu0 0
  %82 = vmatpush1.bf16.msra.mxu0 0
  %83 = vmatprep.subr.bf16.mxu0 0
  %84 = vmatpush1.bf16.msra.mxu0 0
  %85 = vmatprep.subr.bf16.mxu0 0
  %86 = vmatpush1.bf16.msra.mxu0 0
  %87 = vmatprep.subr.bf16.mxu0 0
  %88 = vmatpush1.bf16.msra.mxu0 0
  %89 = vmatprep.subr.bf16.mxu0 0
  %90 = vmatpush1.bf16.msra.mxu0 0
  %91 = vmatprep.subr.bf16.mxu0 0
  %92 = vmatpush1.bf16.msra.mxu0 0
  %93 = vmatprep.subr.bf16.mxu0 0
  %94 = vmatpush1.bf16.msra.mxu0 0
  %95 = vmatprep.subr.bf16.mxu0 0
  %96 = vmatpush1.bf16.msra.mxu0 0
  %97 = vmatprep.mubr.bf16.mxu0 0
  %98 = vmatmul.mubr.bf16.gmra.mrb[0].mxu0 %v60
  %v99 = vpop.f32.mrb[0].mxu0
  %v100 = vadd.f32 0.0, %v99
  %v101 = vpop.f32.mrb[0].mxu0
  %v102 = vpop.f32.mrb[0].mxu0
  %v103 = vadd.f32 0.0, %v102
  %v104 = vpop.f32.mrb[0].mxu0
  %105 = vmatprep.mubr.bf16.mxu0 0
  %106 = vmatmul.mubr.bf16.gmra.mrb[0].mxu0 %v63
  %v107 = vpop.f32.mrb[0].mxu0
  %v108 = vadd.f32 0.0, %v107
  %v109 = vpop.f32.mrb[0].mxu0
  %v110 = vpop.f32.mrb[0].mxu0
  %v111 = vadd.f32 0.0, %v110
  %v112 = vpop.f32.mrb[0].mxu0
  %113 = vdwg.mxu0
  %v114 = vlaneseq
  %v115 = vand.u32 %v114, 127
  %vm116 = vcmp.lt.s32.totalorder %v115, 8
  %v117 = vsel %vm116, %v100, -1e+30
  %v118 = vsel %vm116, %v103, -1e+30
  %v119 = vsel %vm116, %v108, -1e+30
  %v120 = vsel %vm116, %v111, -1e+30
  %121 = vmax.xlane.f32.xlu0 %v117
  %v122 = vpop.xlane.xlu0 %121
  %123 = vmax.xlane.f32.xlu0 %v118
  %v124 = vpop.xlane.xlu0 %123
  %125 = vmax.xlane.f32.xlu0 %v119
  %v126 = vpop.xlane.xlu0 %125
  %127 = vmax.xlane.f32.xlu0 %v120
  %v128 = vpop.xlane.xlu0 %127
  %v129 = vsub.f32 %v117, %v122
  %v130 = vsub.f32 %v118, %v124
  %v131 = vsub.f32 %v119, %v126
  %v132 = vsub.f32 %v120, %v128
  %v133 = vmul.f32 %v129, 1.442695
  %v134 = vpow.pop %v133
  %v135 = vmul.f32 %v130, 1.442695
  %v136 = vpow.pop %v135
  %v137 = vmul.f32 %v131, 1.442695
  %v138 = vpow.pop %v137
  %v139 = vmul.f32 %v132, 1.442695
  %v140 = vpow.pop %v139
  %141 = vadd.xlane.f32.xlu0 %v134
  %v142 = vpop.xlane.xlu0 %141
  %143 = vadd.xlane.f32.xlu0 %v136
  %v144 = vpop.xlane.xlu0 %143
  %145 = vadd.xlane.f32.xlu0 %v138
  %v146 = vpop.xlane.xlu0 %145
  %147 = vadd.xlane.f32.xlu0 %v140
  %v148 = vpop.xlane.xlu0 %147
  %v149 = vrcp.pop %v142
  %v150 = vmul.f32 %v134, %v149
  %v151 = vrcp.pop %v144
  %v152 = vmul.f32 %v136, %v151
  %v153 = vrcp.pop %v146
  %v154 = vmul.f32 %v138, %v153
  %v155 = vrcp.pop %v148
  %v156 = vmul.f32 %v140, %v155
  %157 = vst [vmem:[%s2] sm:$0xff] %v150
  %158 = vst [vmem:[%s2 + $0x8] sm:$0xff] %v152
  %159 = vst [vmem:[%s2 + $0x10] sm:$0xff] %v154
  %160 = vst [vmem:[%s2 + $0x18] sm:$0xff] %v156
  // Predicated region
  $region10: #{moe_forward.3} parent=0 // pred_check
    _
  $region11: #{moe_forward.3} parent=0 // pred_check_branch
    %162 = sbr.rel (0) target = $region13
  $region12: #{moe_forward.3} parent=0 // pred_region
    _
  $region13: #{moe_forward.3} parent=0 // pred_fallthru
    _
  // Predicated region
  $region14: #{moe_forward.3} parent=0 // pred_check
    _
  $region15: #{moe_forward.3} parent=0 // pred_check_branch
    %164 = sbr.rel (0) target = $region17
  $region16: #{moe_forward.3} parent=0 // pred_region
    _
  $region17: #{moe_forward.3} parent=0 // pred_fallthru
    _

// kernel: moe_forward.5
$region0: #{moe_forward.5}
  #allocation0 [shape = 'u32[]', space=smem, size = 0x4, offset = 0x4, fixed_abs, tag = 'smem constant byte address 0x4 - core index']
  #allocation1 [shape = 'u32[144,128]{1,0:T(1,128)}', space=vmem, size = 0x12000, scoped, tag = 'internal scratch']
  #allocation2 [shape = 'f32[32,64]{1,0:T(8,128)}', space=vmem, size = 0x4000, scoped, tag = 'scratch operand']
  %s0 = inlined_call_operand.vmem [shape: bf16[32,64], index: 0, kind: input, shape index: {}]
  %s1 = inlined_call_operand.vmem [shape: bf16[64,64], index: 1, kind: input, shape index: {}]
  %s2 = inlined_call_operand.vmem [shape: bf16[64,64], index: 2, kind: input, shape index: {}]
  %s3 = inlined_call_operand.vmem [shape: bf16[64,64], index: 3, kind: input, shape index: {}]
  %s4 = inlined_call_operand.vmem [shape: f32[32,64], index: 4, kind: output, shape index: {}]
  %s5 = sld [smem:[#allocation0]]
  $region38: #{moe_forward.5} parent=0
    _
  %s7 = ssub.s32 1, %s5
  %s8 = scalar_select 0, %s7, %s5
  // Predicated region
  $region2: #{moe_forward.5} parent=0 // pred_check
    _
  $region3: #{moe_forward.5} parent=0 // pred_check_branch
    %10 = sbr.rel (0) target = $region5
  $region4: #{moe_forward.5} parent=0 // pred_region
    _
  $region5: #{moe_forward.5} parent=0 // pred_fallthru
    _
  // Predicated region
  $region6: #{moe_forward.5} parent=0 // pred_check
    _
  $region7: #{moe_forward.5} parent=0 // pred_check_branch
    %12 = sbr.rel (0) target = $region9
  $region8: #{moe_forward.5} parent=0 // pred_region
    _
  $region9: #{moe_forward.5} parent=0 // pred_fallthru
    _
  // Predicated region
  $region10: #{moe_forward.5} parent=0 // pred_check
    _
  $region11: #{moe_forward.5} parent=0 // pred_check_branch
    %14 = sbr.rel (0) target = $region13
  $region12: #{moe_forward.5} parent=0 // pred_region
    _
  $region13: #{moe_forward.5} parent=0 // pred_fallthru
    _
  // Predicated region
  $region14: #{moe_forward.5} parent=0 // pred_check
    _
  $region15: #{moe_forward.5} parent=0 // pred_check_branch
    %16 = sbr.rel (0) target = $region17
  $region16: #{moe_forward.5} parent=0 // pred_region
    _
  $region17: #{moe_forward.5} parent=0 // pred_fallthru
    _
  %v18 = vld [vmem:[%s0] sm:$0xf]
  %v19 = vld [vmem:[%s0 + $0x4] sm:$0xf]
  %v20 = vld [vmem:[%s0 + $0x8] sm:$0xf]
  %v21 = vld [vmem:[%s0 + $0xc] sm:$0xf]
  %v22 = vld [vmem:[%s1] sm:$0xf]
  %v23 = vld [vmem:[%s1 + $0x4] sm:$0xf]
  %v24 = vld [vmem:[%s1 + $0x8] sm:$0xf]
  %v25 = vld [vmem:[%s1 + $0xc] sm:$0xf]
  %v26 = vld [vmem:[%s1 + $0x10] sm:$0xf]
  %v27 = vld [vmem:[%s1 + $0x14] sm:$0xf]
  %v28 = vld [vmem:[%s1 + $0x18] sm:$0xf]
  %v29 = vld [vmem:[%s1 + $0x1c] sm:$0xf]
  %v34 = vunpack.c.l.b16 %v18
  %v35 = vunpack.c.l.b16 %v19
  %v36 = vunpack.c.l.b16 %v20
  %v37 = vunpack.c.l.b16 %v21
  %v38 = vpack.c.b16 %v35, %v34
  %v39 = vpack.c.b16 %v37, %v36
  %v48 = vunpack.c.l.b16 %v22
  %v49 = vunpack.c.l.b16 %v23
  %v50 = vunpack.c.l.b16 %v24
  %v51 = vunpack.c.l.b16 %v25
  %v52 = vunpack.c.l.b16 %v26
  %v53 = vunpack.c.l.b16 %v27
  %v54 = vunpack.c.l.b16 %v28
  %v55 = vunpack.c.l.b16 %v29
  %v56 = vpack.c.b16 %v49, %v48
  %v57 = vpack.c.b16 %v51, %v50
  %v58 = vpack.c.b16 %v53, %v52
  %v59 = vpack.c.b16 %v55, %v54
  %vm64 = vcmask 523264
  %v66 = vsel %vm64, %v38, 0
  %v69 = vsel %vm64, %v39, 0
  %71 = vmatprep.subr.bf16.mxu0 0
  %72 = vmatpush1.bf16.msra.mxu0 %v56
  %73 = vmatprep.subr.bf16.mxu0 0
  %74 = vmatpush1.bf16.msra.mxu0 %v57
  %75 = vmatprep.subr.bf16.mxu0 0
  %76 = vmatpush1.bf16.msra.mxu0 %v58
  %77 = vmatprep.subr.bf16.mxu0 0
  %78 = vmatpush1.bf16.msra.mxu0 %v59
  %79 = vmatprep.subr.bf16.mxu0 0
  %80 = vmatpush1.bf16.msra.mxu0 0
  %81 = vmatprep.subr.bf16.mxu0 0
  %82 = vmatpush1.bf16.msra.mxu0 0
  %83 = vmatprep.subr.bf16.mxu0 0
  %84 = vmatpush1.bf16.msra.mxu0 0
  %85 = vmatprep.subr.bf16.mxu0 0
  %86 = vmatpush1.bf16.msra.mxu0 0
  %87 = vmatprep.subr.bf16.mxu0 0
  %88 = vmatpush1.bf16.msra.mxu0 0
  %89 = vmatprep.subr.bf16.mxu0 0
  %90 = vmatpush1.bf16.msra.mxu0 0
  %91 = vmatprep.subr.bf16.mxu0 0
  %92 = vmatpush1.bf16.msra.mxu0 0
  %93 = vmatprep.subr.bf16.mxu0 0
  %94 = vmatpush1.bf16.msra.mxu0 0
  %95 = vmatprep.subr.bf16.mxu0 0
  %96 = vmatpush1.bf16.msra.mxu0 0
  %97 = vmatprep.subr.bf16.mxu0 0
  %98 = vmatpush1.bf16.msra.mxu0 0
  %99 = vmatprep.subr.bf16.mxu0 0
  %100 = vmatpush1.bf16.msra.mxu0 0
  %101 = vmatprep.subr.bf16.mxu0 0
  %102 = vmatpush1.bf16.msra.mxu0 0
  %103 = vmatprep.mubr.bf16.mxu0 0
  %104 = vmatmul.mubr.bf16.gmra.mrb[0].mxu0 %v66
  %v105 = vpop.f32.mrb[0].mxu0
  %v106 = vadd.f32 0.0, %v105
  %v107 = vpop.f32.mrb[0].mxu0
  %v108 = vpop.f32.mrb[0].mxu0
  %v109 = vadd.f32 0.0, %v108
  %v110 = vpop.f32.mrb[0].mxu0
  %111 = vmatprep.mubr.bf16.mxu0 0
  %112 = vmatmul.mubr.bf16.gmra.mrb[0].mxu0 %v69
  %v113 = vpop.f32.mrb[0].mxu0
  %v114 = vadd.f32 0.0, %v113
  %v115 = vpop.f32.mrb[0].mxu0
  %v116 = vpop.f32.mrb[0].mxu0
  %v117 = vadd.f32 0.0, %v116
  %v118 = vpop.f32.mrb[0].mxu0
  %119 = vdwg.mxu0
  %v120 = vld [vmem:[%s2] sm:$0xf]
  %v121 = vld [vmem:[%s2 + $0x4] sm:$0xf]
  %v122 = vld [vmem:[%s2 + $0x8] sm:$0xf]
  %v123 = vld [vmem:[%s2 + $0xc] sm:$0xf]
  %v124 = vld [vmem:[%s2 + $0x10] sm:$0xf]
  %v125 = vld [vmem:[%s2 + $0x14] sm:$0xf]
  %v126 = vld [vmem:[%s2 + $0x18] sm:$0xf]
  %v127 = vld [vmem:[%s2 + $0x1c] sm:$0xf]
  %v136 = vunpack.c.l.b16 %v120
  %v137 = vunpack.c.l.b16 %v121
  %v138 = vunpack.c.l.b16 %v122
  %v139 = vunpack.c.l.b16 %v123
  %v140 = vunpack.c.l.b16 %v124
  %v141 = vunpack.c.l.b16 %v125
  %v142 = vunpack.c.l.b16 %v126
  %v143 = vunpack.c.l.b16 %v127
  %v144 = vpack.c.b16 %v137, %v136
  %v145 = vpack.c.b16 %v139, %v138
  %v146 = vpack.c.b16 %v141, %v140
  %v147 = vpack.c.b16 %v143, %v142
  %152 = vmatprep.subr.bf16.mxu0 0
  %153 = vmatpush1.bf16.msra.mxu0 %v144
  %154 = vmatprep.subr.bf16.mxu0 0
  %155 = vmatpush1.bf16.msra.mxu0 %v145
  %156 = vmatprep.subr.bf16.mxu0 0
  %157 = vmatpush1.bf16.msra.mxu0 %v146
  %158 = vmatprep.subr.bf16.mxu0 0
  %159 = vmatpush1.bf16.msra.mxu0 %v147
  %160 = vmatprep.subr.bf16.mxu0 0
  %161 = vmatpush1.bf16.msra.mxu0 0
  %162 = vmatprep.subr.bf16.mxu0 0
  %163 = vmatpush1.bf16.msra.mxu0 0
  %164 = vmatprep.subr.bf16.mxu0 0
  %165 = vmatpush1.bf16.msra.mxu0 0
  %166 = vmatprep.subr.bf16.mxu0 0
  %167 = vmatpush1.bf16.msra.mxu0 0
  %168 = vmatprep.subr.bf16.mxu0 0
  %169 = vmatpush1.bf16.msra.mxu0 0
  %170 = vmatprep.subr.bf16.mxu0 0
  %171 = vmatpush1.bf16.msra.mxu0 0
  %172 = vmatprep.subr.bf16.mxu0 0
  %173 = vmatpush1.bf16.msra.mxu0 0
  %174 = vmatprep.subr.bf16.mxu0 0
  %175 = vmatpush1.bf16.msra.mxu0 0
  %176 = vmatprep.subr.bf16.mxu0 0
  %177 = vmatpush1.bf16.msra.mxu0 0
  %178 = vmatprep.subr.bf16.mxu0 0
  %179 = vmatpush1.bf16.msra.mxu0 0
  %180 = vmatprep.subr.bf16.mxu0 0
  %181 = vmatpush1.bf16.msra.mxu0 0
  %182 = vmatprep.subr.bf16.mxu0 0
  %183 = vmatpush1.bf16.msra.mxu0 0
  %184 = vmatprep.mubr.bf16.mxu0 0
  %185 = vmatmul.mubr.bf16.gmra.mrb[0].mxu0 %v66
  %v186 = vpop.f32.mrb[0].mxu0
  %v187 = vadd.f32 0.0, %v186
  %v188 = vpop.f32.mrb[0].mxu0
  %v189 = vpop.f32.mrb[0].mxu0
  %v190 = vadd.f32 0.0, %v189
  %v191 = vpop.f32.mrb[0].mxu0
  %192 = vmatprep.mubr.bf16.mxu0 0
  %193 = vmatmul.mubr.bf16.gmra.mrb[0].mxu0 %v69
  %v194 = vpop.f32.mrb[0].mxu0
  %v195 = vadd.f32 0.0, %v194
  %v196 = vpop.f32.mrb[0].mxu0
  %v197 = vpop.f32.mrb[0].mxu0
  %v198 = vadd.f32 0.0, %v197
  %v199 = vpop.f32.mrb[0].mxu0
  %200 = vdwg.mxu0
  %v201 = vxor.u32 %v106, 2147483648
  %v202 = vxor.u32 %v109, 2147483648
  %v203 = vxor.u32 %v114, 2147483648
  %v204 = vxor.u32 %v117, 2147483648
  %v205 = vmul.f32 %v201, 1.442695
  %v206 = vpow.pop %v205
  %v207 = vmul.f32 %v202, 1.442695
  %v208 = vpow.pop %v207
  %v209 = vmul.f32 %v203, 1.442695
  %v210 = vpow.pop %v209
  %v211 = vmul.f32 %v204, 1.442695
  %v212 = vpow.pop %v211
  %v213 = vadd.f32 %v206, 1.0
  %v214 = vadd.f32 %v208, 1.0
  %v215 = vadd.f32 %v210, 1.0
  %v216 = vadd.f32 %v212, 1.0
  %v217 = vrcp.pop %v213
  %v218 = vmul.f32 1.0, %v217
  %v219 = vrcp.pop %v214
  %v220 = vmul.f32 1.0, %v219
  %v221 = vrcp.pop %v215
  %v222 = vmul.f32 1.0, %v221
  %v223 = vrcp.pop %v216
  %v224 = vmul.f32 1.0, %v223
  %v225 = vmul.f32 %v106, %v218
  %v226 = vmul.f32 %v109, %v220
  %v227 = vmul.f32 %v114, %v222
  %v228 = vmul.f32 %v117, %v224
  %v229 = vmul.f32 %v225, %v187
  %v230 = vmul.f32 %v226, %v190
  %v231 = vmul.f32 %v227, %v195
  %v232 = vmul.f32 %v228, %v198
  %v233 = vpack.c.bf16 %v230, %v229
  %v234 = vpack.c.bf16 %v232, %v231
  %v235 = vld [vmem:[%s3] sm:$0xf]
  %v236 = vld [vmem:[%s3 + $0x4] sm:$0xf]
  %v237 = vld [vmem:[%s3 + $0x8] sm:$0xf]
  %v238 = vld [vmem:[%s3 + $0xc] sm:$0xf]
  %v239 = vld [vmem:[%s3 + $0x10] sm:$0xf]
  %v240 = vld [vmem:[%s3 + $0x14] sm:$0xf]
  %v241 = vld [vmem:[%s3 + $0x18] sm:$0xf]
  %v242 = vld [vmem:[%s3 + $0x1c] sm:$0xf]
  %v251 = vunpack.c.l.b16 %v235
  %v252 = vunpack.c.l.b16 %v236
  %v253 = vunpack.c.l.b16 %v237
  %v254 = vunpack.c.l.b16 %v238
  %v255 = vunpack.c.l.b16 %v239
  %v256 = vunpack.c.l.b16 %v240
  %v257 = vunpack.c.l.b16 %v241
  %v258 = vunpack.c.l.b16 %v242
  %v259 = vpack.c.b16 %v252, %v251
  %v260 = vpack.c.b16 %v254, %v253
  %v261 = vpack.c.b16 %v256, %v255
  %v262 = vpack.c.b16 %v258, %v257
  %v268 = vsel %vm64, %v233, 0
  %v271 = vsel %vm64, %v234, 0
  %273 = vmatprep.subr.bf16.mxu0 0
  %274 = vmatpush1.bf16.msra.mxu0 %v259
  %275 = vmatprep.subr.bf16.mxu0 0
  %276 = vmatpush1.bf16.msra.mxu0 %v260
  %277 = vmatprep.subr.bf16.mxu0 0
  %278 = vmatpush1.bf16.msra.mxu0 %v261
  %279 = vmatprep.subr.bf16.mxu0 0
  %280 = vmatpush1.bf16.msra.mxu0 %v262
  %281 = vmatprep.subr.bf16.mxu0 0
  %282 = vmatpush1.bf16.msra.mxu0 0
  %283 = vmatprep.subr.bf16.mxu0 0
  %284 = vmatpush1.bf16.msra.mxu0 0
  %285 = vmatprep.subr.bf16.mxu0 0
  %286 = vmatpush1.bf16.msra.mxu0 0
  %287 = vmatprep.subr.bf16.mxu0 0
  %288 = vmatpush1.bf16.msra.mxu0 0
  %289 = vmatprep.subr.bf16.mxu0 0
  %290 = vmatpush1.bf16.msra.mxu0 0
  %291 = vmatprep.subr.bf16.mxu0 0
  %292 = vmatpush1.bf16.msra.mxu0 0
  %293 = vmatprep.subr.bf16.mxu0 0
  %294 = vmatpush1.bf16.msra.mxu0 0
  %295 = vmatprep.subr.bf16.mxu0 0
  %296 = vmatpush1.bf16.msra.mxu0 0
  %297 = vmatprep.subr.bf16.mxu0 0
  %298 = vmatpush1.bf16.msra.mxu0 0
  %299 = vmatprep.subr.bf16.mxu0 0
  %300 = vmatpush1.bf16.msra.mxu0 0
  %301 = vmatprep.subr.bf16.mxu0 0
  %302 = vmatpush1.bf16.msra.mxu0 0
  %303 = vmatprep.subr.bf16.mxu0 0
  %304 = vmatpush1.bf16.msra.mxu0 0
  %305 = vmatprep.mubr.bf16.mxu0 0
  %306 = vmatmul.mubr.bf16.gmra.mrb[0].mxu0 %v268
  %v307 = vpop.f32.mrb[0].mxu0
  %v308 = vadd.f32 0.0, %v307
  %v309 = vpop.f32.mrb[0].mxu0
  %v310 = vpop.f32.mrb[0].mxu0
  %v311 = vadd.f32 0.0, %v310
  %v312 = vpop.f32.mrb[0].mxu0
  %313 = vmatprep.mubr.bf16.mxu0 0
  %314 = vmatmul.mubr.bf16.gmra.mrb[0].mxu0 %v271
  %v315 = vpop.f32.mrb[0].mxu0
  %v316 = vadd.f32 0.0, %v315
  %v317 = vpop.f32.mrb[0].mxu0
  %v318 = vpop.f32.mrb[0].mxu0
  %v319 = vadd.f32 0.0, %v318
  %v320 = vpop.f32.mrb[0].mxu0
  %321 = vdwg.mxu0
  %p322 = scmp.eq.s32.totalorder 0, 0
  // Predicated region
  $region18: #{moe_forward.5} parent=0 // pred_check
    %p323 = pneg %p322
  $region19: #{moe_forward.5} parent=0 // pred_check_branch
    %325 = sbr.rel (%p323) target = $region21
  $region20: #{moe_forward.5} parent=0 // pred_region
    %326 = vst.msk [vmem:[#allocation2] sm:$0xff] %vm64, %v308
    %327 = vst.msk [vmem:[#allocation2 + $0x8] sm:$0xff] %vm64, %v311
    %328 = vst.msk [vmem:[#allocation2 + $0x10] sm:$0xff] %vm64, %v316
    %329 = vst.msk [vmem:[#allocation2 + $0x18] sm:$0xff] %vm64, %v319
  $region21: #{moe_forward.5} parent=0 // pred_fallthru
    _
  %p330 = scmp.gt.s32.totalorder 0, 0
  // Predicated region
  $region22: #{moe_forward.5} parent=0 // pred_check
    %p331 = pneg %p330
  $region23: #{moe_forward.5} parent=0 // pred_check_branch
    %333 = sbr.rel (%p331) target = $region25
  $region24: #{moe_forward.5} parent=0 // pred_region
    %v334 = vld [vmem:[#allocation2] sm:$0xff]
    %v335 = vld [vmem:[#allocation2 + $0x8] sm:$0xff]
    %v336 = vld [vmem:[#allocation2 + $0x10] sm:$0xff]
    %v337 = vld [vmem:[#allocation2 + $0x18] sm:$0xff]
    %v338 = vadd.f32 %v334, %v308
    %v339 = vadd.f32 %v335, %v311
    %v340 = vadd.f32 %v336, %v316
    %v341 = vadd.f32 %v337, %v319
    %342 = vst.msk [vmem:[#allocation2] sm:$0xff] %vm64, %v338
    %343 = vst.msk [vmem:[#allocation2 + $0x8] sm:$0xff] %vm64, %v339
    %344 = vst.msk [vmem:[#allocation2 + $0x10] sm:$0xff] %vm64, %v340
    %345 = vst.msk [vmem:[#allocation2 + $0x18] sm:$0xff] %vm64, %v341
  $region25: #{moe_forward.5} parent=0 // pred_fallthru
    _
  // Predicated region
  $region26: #{moe_forward.5} parent=0 // pred_check
    %p346 = pneg %p322
  $region27: #{moe_forward.5} parent=0 // pred_check_branch
    %348 = sbr.rel (%p346) target = $region29
  $region28: #{moe_forward.5} parent=0 // pred_region
    %v349 = vld [vmem:[#allocation2] sm:$0xff]
    %v350 = vld [vmem:[#allocation2 + $0x8] sm:$0xff]
    %v351 = vld [vmem:[#allocation2 + $0x10] sm:$0xff]
    %v352 = vld [vmem:[#allocation2 + $0x18] sm:$0xff]
    %353 = vst.msk [vmem:[%s4] sm:$0xff] %vm64, %v349
    %354 = vst.msk [vmem:[%s4 + $0x8] sm:$0xff] %vm64, %v350
    %355 = vst.msk [vmem:[%s4 + $0x10] sm:$0xff] %vm64, %v351
    %356 = vst.msk [vmem:[%s4 + $0x18] sm:$0xff] %vm64, %v352
  $region29: #{moe_forward.5} parent=0 // pred_fallthru
    _
  // Predicated region
  $region30: #{moe_forward.5} parent=0 // pred_check
    _
  $region31: #{moe_forward.5} parent=0 // pred_check_branch
    %358 = sbr.rel (0) target = $region33
  $region32: #{moe_forward.5} parent=0 // pred_region
    _
  $region33: #{moe_forward.5} parent=0 // pred_fallthru
    _
  // Predicated region
  $region34: #{moe_forward.5} parent=0 // pred_check
    _
  $region35: #{moe_forward.5} parent=0 // pred_check_branch
    %360 = sbr.rel (0) target = $region37
  $region36: #{moe_forward.5} parent=0 // pred_region
    _
  $region37: #{moe_forward.5} parent=0 // pred_fallthru
    _

// kernel: moe_forward.4
$region0: #{moe_forward.4}
  #allocation0 [shape = 'u32[]', space=smem, size = 0x4, offset = 0x4, fixed_abs, tag = 'smem constant byte address 0x4 - core index']
  #allocation1 [shape = 'u32[144,128]{1,0:T(1,128)}', space=vmem, size = 0x12000, scoped, tag = 'internal scratch']
  #allocation2 [shape = 'f32[8,64]{1,0:T(8,128)}', space=vmem, size = 0x1000, scoped, tag = 'scratch operand']
  #allocation3 [shape = 's32[1]{0}', space=sflag, size = 0x4, scoped, tag = 'scoped memory for moe_forward.4']
  #allocation4 [shape = 'u8[512]{0}', space=smem, size = 0x200, scoped, tag = 'prefetched SMEM operand 0']
  #allocation5 [shape = 'u8[512]{0}', space=smem, size = 0x200, scoped, tag = 'prefetched SMEM operand 1']
  %s0 = inlined_call_operand.vmem [shape: s32[15], index: 0, kind: input, shape index: {}]
  %s1 = inlined_call_operand.vmem [shape: s32[15], index: 1, kind: input, shape index: {}]
  %s2 = inlined_call_operand.vmem [shape: bf16[120,64], index: 2, kind: input, shape index: {}]
  %s3 = inlined_call_operand.vmem [shape: bf16[8,64,32], index: 3, kind: input, shape index: {}]
  %s4 = inlined_call_operand.vmem [shape: bf16[8,64,32], index: 4, kind: input, shape index: {}]
  %s5 = inlined_call_operand.vmem [shape: bf16[8,32,64], index: 5, kind: input, shape index: {}]
  %s6 = inlined_call_operand.vmem [shape: bf16[120,64], index: 6, kind: output, shape index: {}]
  %s7 = sld [smem:[#allocation0]]
  $region73: #{moe_forward.4} parent=0
    _
  %s9 = ssub.s32 1, %s7
  %s10 = scalar_select 0, %s9, %s7
  %s11 = sshll.u32 %s0, 4
  %s12 = int_to_ptr.vmem [resolvable:$true] %s11
  %14 = dma.vmem_to_smem %s12, 16, [#allocation4], [#allocation3]
  %s15 = sshll.u32 %s1, 4
  %s16 = int_to_ptr.vmem [resolvable:$true] %s15
  %18 = dma.vmem_to_smem %s16, 16, [#allocation5], [#allocation3]
  %19 = dma.done [#allocation3], 32
  %20 = sfence
  loop: start=0, step=1, limit=17
  $region2: #{moe_forward.4} parent=0 // loop_pre_header
    _
  $region3: #{moe_forward.4} parent=0 // loop_header
    %s22 = sphi 0, %s26
    %p23 = scmp.ge.s32.totalorder %s22, 17
    %s29 = sphi 0, %s41
    %s30 = sphi 0, %s37
    %s31 = sphi 0, %s29
    %s32 = sphi 0, %s30
    %s33 = sphi 0, %s31
    %s34 = sphi 0, %s32
    %s44 = sphi 0, %s46
    %s47 = sphi 0, %s44
    %s48 = sphi 0, %s47
    %s64 = sphi 0, %s48
    %s74 = sphi 0, %s76
    %s77 = sphi 0, %s74
    %s78 = sphi 0, %s77
    %s94 = sphi 0, %s78
    %s104 = sphi 0, %s106
    %s107 = sphi 0, %s104
    %s108 = sphi 0, %s107
    %s124 = sphi 0, %s108
    %s134 = sphi 0, %s136
    %s137 = sphi 0, %s134
    %s138 = sphi 0, %s137
    %s154 = sphi 0, %s138
    %s160 = sphi 0, %s162
    %s163 = sphi 0, %s160
    %s164 = sphi 0, %s163
    %s180 = sphi 0, %s164
  $region4: #{moe_forward.4} parent=0 // loop_header_branch
    %25 = sbr.rel (%p23) target = $region8
  $region5: #{moe_forward.4} parent=0 // loop_body
    %s27 = ssub.s32 %s22, 1
    %s28 = ssub.s32 %s22, 2
    %s35 = sadd.s32 1, %s30
    %p36 = scmp.ge.s32.totalorder %s35, 1
    %s37 = scalar_select %p36, 0, %s35
    %s38 = sadd.s32 1, %s29
    %s39 = scalar_select %p36, %s38, %s29
    %p40 = scmp.ge.s32.totalorder %s39, 15
    %s41 = scalar_select %p40, 0, %s39
    %s42 = ssub.s32 %s29, %s41
    %p43 = scmp.eq.s32.totalorder %s42, 0
    %s45 = sadd.s32 %s44, 1
    %s46 = scalar_select %p43, %s44, %s45
    %p49 = pneg %p43
    %p50 = scmp.eq.s32.totalorder %s22, 14
    %p51 = por %p49, %p50
    %p52 = scmp.ne.s32.totalorder %s44, %s47
    %p53 = scmp.eq.s32.totalorder %s22, 0
    %p54 = por %p52, %p53
    %p55 = scmp.ne.s32.totalorder %s44, %s47
    %p56 = scmp.eq.s32.totalorder %s27, 14
    %p57 = por %p55, %p56
    %p58 = scmp.ne.s32.totalorder %s47, %s48
    %p59 = scmp.eq.s32.totalorder %s27, 0
    %p60 = por %p58, %p59
    %p61 = scmp.ne.s32.totalorder %s47, %s48
    %p62 = scmp.eq.s32.totalorder %s28, 14
    %p63 = por %p61, %p62
    %p65 = scmp.ne.s32.totalorder %s48, %s64
    %p66 = scmp.eq.s32.totalorder %s28, 0
    %p67 = por %p65, %p66
    %s68 = sld [smem:[#allocation4 + %s29]]
    %s69 = sld [smem:[#allocation4 + %s41]]
    %s70 = ssub.s32 %s68, %s69
    %s71 = ssub.s32 %s30, %s37
    %s72 = sor.u32 %s70, %s71
    %p73 = scmp.eq.s32.totalorder %s72, 0
    %s75 = sadd.s32 %s74, 1
    %s76 = scalar_select %p73, %s74, %s75
    %p79 = pneg %p73
    %p80 = scmp.eq.s32.totalorder %s22, 14
    %p81 = por %p79, %p80
    %p82 = scmp.ne.s32.totalorder %s74, %s77
    %p83 = scmp.eq.s32.totalorder %s22, 0
    %p84 = por %p82, %p83
    %p85 = scmp.ne.s32.totalorder %s74, %s77
    %p86 = scmp.eq.s32.totalorder %s27, 14
    %p87 = por %p85, %p86
    %p88 = scmp.ne.s32.totalorder %s77, %s78
    %p89 = scmp.eq.s32.totalorder %s27, 0
    %p90 = por %p88, %p89
    %p91 = scmp.ne.s32.totalorder %s77, %s78
    %p92 = scmp.eq.s32.totalorder %s28, 14
    %p93 = por %p91, %p92
    %p95 = scmp.ne.s32.totalorder %s78, %s94
    %p96 = scmp.eq.s32.totalorder %s28, 0
    %p97 = por %p95, %p96
    %s98 = sld [smem:[#allocation4 + %s29]]
    %s99 = sld [smem:[#allocation4 + %s41]]
    %s100 = ssub.s32 %s98, %s99
    %s101 = ssub.s32 %s30, %s37
    %s102 = sor.u32 %s100, %s101
    %p103 = scmp.eq.s32.totalorder %s102, 0
    %s105 = sadd.s32 %s104, 1
    %s106 = scalar_select %p103, %s104, %s105
    %p109 = pneg %p103
    %p110 = scmp.eq.s32.totalorder %s22, 14
    %p111 = por %p109, %p110
    %p112 = scmp.ne.s32.totalorder %s104, %s107
    %p113 = scmp.eq.s32.totalorder %s22, 0
    %p114 = por %p112, %p113
    %p115 = scmp.ne.s32.totalorder %s104, %s107
    %p116 = scmp.eq.s32.totalorder %s27, 14
    %p117 = por %p115, %p116
    %p118 = scmp.ne.s32.totalorder %s107, %s108
    %p119 = scmp.eq.s32.totalorder %s27, 0
    %p120 = por %p118, %p119
    %p121 = scmp.ne.s32.totalorder %s107, %s108
    %p122 = scmp.eq.s32.totalorder %s28, 14
    %p123 = por %p121, %p122
    %p125 = scmp.ne.s32.totalorder %s108, %s124
    %p126 = scmp.eq.s32.totalorder %s28, 0
    %p127 = por %p125, %p126
    %s128 = sld [smem:[#allocation4 + %s29]]
    %s129 = sld [smem:[#allocation4 + %s41]]
    %s130 = ssub.s32 %s128, %s129
    %s131 = ssub.s32 %s30, %s37
    %s132 = sor.u32 %s130, %s131
    %p133 = scmp.eq.s32.totalorder %s132, 0
    %s135 = sadd.s32 %s134, 1
    %s136 = scalar_select %p133, %s134, %s135
    %p139 = pneg %p133
    %p140 = scmp.eq.s32.totalorder %s22, 14
    %p141 = por %p139, %p140
    %p142 = scmp.ne.s32.totalorder %s134, %s137
    %p143 = scmp.eq.s32.totalorder %s22, 0
    %p144 = por %p142, %p143
    %p145 = scmp.ne.s32.totalorder %s134, %s137
    %p146 = scmp.eq.s32.totalorder %s27, 14
    %p147 = por %p145, %p146
    %p148 = scmp.ne.s32.totalorder %s137, %s138
    %p149 = scmp.eq.s32.totalorder %s27, 0
    %p150 = por %p148, %p149
    %p151 = scmp.ne.s32.totalorder %s137, %s138
    %p152 = scmp.eq.s32.totalorder %s28, 14
    %p153 = por %p151, %p152
    %p155 = scmp.ne.s32.totalorder %s138, %s154
    %p156 = scmp.eq.s32.totalorder %s28, 0
    %p157 = por %p155, %p156
    %s158 = ssub.s32 %s29, %s41
    %p159 = scmp.eq.s32.totalorder %s158, 0
    %s161 = sadd.s32 %s160, 1
    %s162 = scalar_select %p159, %s160, %s161
    %p165 = pneg %p159
    %p166 = scmp.eq.s32.totalorder %s22, 14
    %p167 = por %p165, %p166
    %p168 = scmp.ne.s32.totalorder %s160, %s163
    %p169 = scmp.eq.s32.totalorder %s22, 0
    %p170 = por %p168, %p169
    %p171 = scmp.ne.s32.totalorder %s160, %s163
    %p172 = scmp.eq.s32.totalorder %s27, 14
    %p173 = por %p171, %p172
    %p174 = scmp.ne.s32.totalorder %s163, %s164
    %p175 = scmp.eq.s32.totalorder %s27, 0
    %p176 = por %p174, %p175
    %p177 = scmp.ne.s32.totalorder %s163, %s164
    %p178 = scmp.eq.s32.totalorder %s28, 14
    %p179 = por %p177, %p178
    %p181 = scmp.ne.s32.totalorder %s164, %s180
    %p182 = scmp.eq.s32.totalorder %s28, 0
    %p183 = por %p181, %p182
    %p184 = scmp.le.s32.totalorder 1, %s22
    %p185 = scmp.lt.s32.totalorder %s22, 16
    %p186 = pnand %p184, %p185
    %p187 = pneg %p186
    // Predicated region
    $region9: #{moe_forward.4} parent=5 // pred_check
      _
    $region10: #{moe_forward.4} parent=5 // pred_check_branch
      %189 = sbr.rel (%p186) target = $region12
    $region11: #{moe_forward.4} parent=5 // pred_region
      %s190 = ssub.s32 %s22, 1
    $region12: #{moe_forward.4} parent=5 // pred_fallthru
      _
    %p191 = scmp.lt.s32.totalorder %s22, 15
    // Predicated region
    $region13: #{moe_forward.4} parent=5 // pred_check
      %p192 = pneg %p191
    $region14: #{moe_forward.4} parent=5 // pred_check_branch
      %194 = sbr.rel (%p192) target = $region16
    $region15: #{moe_forward.4} parent=5 // pred_region
      // Predicated region
      $region17: #{moe_forward.4} parent=15 // pred_check
        %p195 = pneg %p54
      $region18: #{moe_forward.4} parent=15 // pred_check_branch
        %197 = sbr.rel (%p195) target = $region20
      $region19: #{moe_forward.4} parent=15 // pred_region
        %p198 = scmp.lt.s32.totalorder %s29, 14
        %s199 = scalar_select %p198, %s29, 14
        %s200 = smul.addr %s199, 4
        %s201 = scalar_lea.vmem %s2, %s200
      $region20: #{moe_forward.4} parent=15 // pred_fallthru
        _
      // Predicated region
      $region21: #{moe_forward.4} parent=15 // pred_check
        %p202 = pneg %p84
      $region22: #{moe_forward.4} parent=15 // pred_check_branch
        %204 = sbr.rel (%p202) target = $region24
      $region23: #{moe_forward.4} parent=15 // pred_region
        %s205 = sld [smem:[#allocation4 + %s29]]
        %p206 = scmp.lt.s32.totalorder %s205, 7
        %s207 = scalar_select %p206, %s205, 7
        %p208 = scmp.lt.s32.totalorder %s30, 0
        %s209 = scalar_select %p208, %s30, 0
        %s210 = smul.addr %s207, 8
        %s211 = sadd.s32 %s209, %s210
        %s212 = smul.addr %s211, 4
        %s213 = scalar_lea.vmem %s3, %s212
        %s214 = sld [smem:[#allocation4 + %s29]]
      $region24: #{moe_forward.4} parent=15 // pred_fallthru
        _
      // Predicated region
      $region25: #{moe_forward.4} parent=15 // pred_check
        %p215 = pneg %p114
      $region26: #{moe_forward.4} parent=15 // pred_check_branch
        %217 = sbr.rel (%p215) target = $region28
      $region27: #{moe_forward.4} parent=15 // pred_region
        %s218 = sld [smem:[#allocation4 + %s29]]
        %p219 = scmp.lt.s32.totalorder %s218, 7
        %s220 = scalar_select %p219, %s218, 7
        %p221 = scmp.lt.s32.totalorder %s30, 0
        %s222 = scalar_select %p221, %s30, 0
        %s223 = smul.addr %s220, 8
        %s224 = sadd.s32 %s222, %s223
        %s225 = smul.addr %s224, 4
        %s226 = scalar_lea.vmem %s4, %s225
        %s227 = sld [smem:[#allocation4 + %s29]]
      $region28: #{moe_forward.4} parent=15 // pred_fallthru
        _
      // Predicated region
      $region29: #{moe_forward.4} parent=15 // pred_check
        %p228 = pneg %p144
      $region30: #{moe_forward.4} parent=15 // pred_check_branch
        %230 = sbr.rel (%p228) target = $region32
      $region31: #{moe_forward.4} parent=15 // pred_region
        %s231 = sld [smem:[#allocation4 + %s29]]
        %s232 = smul.u32 4, %s30
        %p233 = scmp.lt.s32.totalorder %s231, 7
        %s234 = scalar_select %p233, %s231, 7
        %p235 = scmp.lt.s32.totalorder %s232, 3
        %s236 = scalar_select %p235, %s232, 3
        %s237 = smul.addr %s234, 4
        %s238 = sadd.s32 %s236, %s237
        %s239 = smul.addr %s238, 4
        %s240 = scalar_lea.vmem %s5, %s239
        %s241 = sld [smem:[#allocation4 + %s29]]
        %s242 = smul.u32 4, %s30
      $region32: #{moe_forward.4} parent=15 // pred_fallthru
        _
    $region16: #{moe_forward.4} parent=5 // pred_fallthru
      _
    %p243 = scmp.le.s32.totalorder 1, %s22
    %p244 = scmp.lt.s32.totalorder %s22, 16
    %p245 = pnand %p243, %p244
    %p246 = pneg %p245
    // Predicated region
    $region33: #{moe_forward.4} parent=5 // pred_check
      _
    $region34: #{moe_forward.4} parent=5 // pred_check_branch
      %248 = sbr.rel (%p245) target = $region36
    $region35: #{moe_forward.4} parent=5 // pred_region
      %s249 = ssub.s32 %s22, 1
      %p250 = scmp.lt.s32.totalorder %s31, 14
      %s251 = scalar_select %p250, %s31, 14
      %s252 = smul.addr %s251, 4
      %s253 = scalar_lea.vmem %s2, %s252
      %p254 = pneg %p60
      %p255 = pneg %p57
      %s256 = sld [smem:[#allocation4 + %s31]]
      %p257 = scmp.lt.s32.totalorder %s256, 7
      %s258 = scalar_select %p257, %s256, 7
      %p259 = scmp.lt.s32.totalorder %s32, 0
      %s260 = scalar_select %p259, %s32, 0
      %s261 = smul.addr %s258, 8
      %s262 = sadd.s32 %s260, %s261
      %s263 = smul.addr %s262, 4
      %s264 = scalar_lea.vmem %s3, %s263
      %p265 = pneg %p90
      %p266 = pneg %p87
      %s267 = sld [smem:[#allocation4 + %s31]]
      %p268 = scmp.lt.s32.totalorder %s267, 7
      %s269 = scalar_select %p268, %s267, 7
      %p270 = scmp.lt.s32.totalorder %s32, 0
      %s271 = scalar_select %p270, %s32, 0
      %s272 = smul.addr %s269, 8
      %s273 = sadd.s32 %s271, %s272
      %s274 = smul.addr %s273, 4
      %s275 = scalar_lea.vmem %s4, %s274
      %p276 = pneg %p120
      %p277 = pneg %p117
      %s278 = sld [smem:[#allocation4 + %s31]]
      %s279 = smul.u32 4, %s32
      %p280 = scmp.lt.s32.totalorder %s278, 7
      %s281 = scalar_select %p280, %s278, 7
      %p282 = scmp.lt.s32.totalorder %s279, 3
      %s283 = scalar_select %p282, %s279, 3
      %s284 = smul.addr %s281, 4
      %s285 = sadd.s32 %s283, %s284
      %s286 = smul.addr %s285, 4
      %s287 = scalar_lea.vmem %s5, %s286
      %p288 = pneg %p150
      %p289 = pneg %p147
      %p290 = pneg %p176
      %p291 = pneg %p173
      %p292 = scmp.lt.s32.totalorder %s31, 14
      %s293 = scalar_select %p292, %s31, 14
      %s294 = smul.addr %s293, 4
      %s295 = scalar_lea.vmem %s6, %s294
      %p296 = scmp.lt.s32.totalorder %s31, 14
      %s297 = scalar_select %p296, %s31, 14
      %s298 = smul.addr %s297, 4
      %s299 = scalar_lea.vmem %s2, %s298
      %s300 = sld [smem:[#allocation4 + %s31]]
      %p301 = scmp.lt.s32.totalorder %s300, 7
      %s302 = scalar_select %p301, %s300, 7
      %p303 = scmp.lt.s32.totalorder %s32, 0
      %s304 = scalar_select %p303, %s32, 0
      %s305 = smul.addr %s302, 8
      %s306 = sadd.s32 %s304, %s305
      %s307 = smul.addr %s306, 4
      %s308 = scalar_lea.vmem %s3, %s307
      %s309 = sld [smem:[#allocation4 + %s31]]
      %s310 = sld [smem:[#allocation4 + %s31]]
      %p311 = scmp.lt.s32.totalorder %s310, 7
      %s312 = scalar_select %p311, %s310, 7
      %p313 = scmp.lt.s32.totalorder %s32, 0
      %s314 = scalar_select %p313, %s32, 0
      %s315 = smul.addr %s312, 8
      %s316 = sadd.s32 %s314, %s315
      %s317 = smul.addr %s316, 4
      %s318 = scalar_lea.vmem %s4, %s317
      %s319 = sld [smem:[#allocation4 + %s31]]
      %s320 = sld [smem:[#allocation4 + %s31]]
      %s321 = smul.u32 4, %s32
      %p322 = scmp.lt.s32.totalorder %s320, 7
      %s323 = scalar_select %p322, %s320, 7
      %p324 = scmp.lt.s32.totalorder %s321, 3
      %s325 = scalar_select %p324, %s321, 3
      %s326 = smul.addr %s323, 4
      %s327 = sadd.s32 %s325, %s326
      %s328 = smul.addr %s327, 4
      %s329 = scalar_lea.vmem %s5, %s328
      %s330 = sld [smem:[#allocation4 + %s31]]
      %s331 = smul.u32 4, %s32
      %p332 = scmp.lt.s32.totalorder %s31, 14
      %s333 = scalar_select %p332, %s31, 14
      %s334 = smul.addr %s333, 4
      %s335 = scalar_lea.vmem %s6, %s334
      %p337 = scmp.eq.s32.totalorder %s32, 0
      %s338 = sld [smem:[#allocation5 + %s31]]
      %p339 = scmp.ne.s32.totalorder %s338, 0
      // Predicated region
      $region37: #{moe_forward.4} parent=35 // pred_check
        %p340 = pneg %p339
      $region38: #{moe_forward.4} parent=35 // pred_check_branch
        %342 = sbr.rel (%p340) target = $region40
      $region39: #{moe_forward.4} parent=35 // pred_region
        %v343 = vld [vmem:[%s299] sm:$0xf]
        %v344 = vld [vmem:[%s308] sm:$0xf]
        %v345 = vld [vmem:[%s308 + $0x4] sm:$0xf]
        %v346 = vld [vmem:[%s308 + $0x8] sm:$0xf]
        %v347 = vld [vmem:[%s308 + $0xc] sm:$0xf]
        %v348 = vld [vmem:[%s308 + $0x10] sm:$0xf]
        %v349 = vld [vmem:[%s308 + $0x14] sm:$0xf]
        %v350 = vld [vmem:[%s308 + $0x18] sm:$0xf]
        %v351 = vld [vmem:[%s308 + $0x1c] sm:$0xf]
        %v360 = vunpack.c.l.b16 %v344
        %v361 = vunpack.c.l.b16 %v345
        %v362 = vunpack.c.l.b16 %v346
        %v363 = vunpack.c.l.b16 %v347
        %v364 = vunpack.c.l.b16 %v348
        %v365 = vunpack.c.l.b16 %v349
        %v366 = vunpack.c.l.b16 %v350
        %v367 = vunpack.c.l.b16 %v351
        %v368 = vpack.c.b16 %v361, %v360
        %v369 = vpack.c.b16 %v363, %v362
        %v370 = vpack.c.b16 %v365, %v364
        %v371 = vpack.c.b16 %v367, %v366
        %vm376 = vcmask 523264
        %v378 = vsel %vm376, %v343, 0
        %380 = vmatprep.subr.bf16.mxu0 0
        %381 = vmatpush1.bf16.msra.mxu0 %v368
        %382 = vmatprep.subr.bf16.mxu0 0
        %383 = vmatpush1.bf16.msra.mxu0 %v369
        %384 = vmatprep.subr.bf16.mxu0 0
        %385 = vmatpush1.bf16.msra.mxu0 %v370
        %386 = vmatprep.subr.bf16.mxu0 0
        %387 = vmatpush1.bf16.msra.mxu0 %v371
        %388 = vmatprep.subr.bf16.mxu0 0
        %389 = vmatpush1.bf16.msra.mxu0 0
        %390 = vmatprep.subr.bf16.mxu0 0
        %391 = vmatpush1.bf16.msra.mxu0 0
        %392 = vmatprep.subr.bf16.mxu0 0
        %393 = vmatpush1.bf16.msra.mxu0 0
        %394 = vmatprep.subr.bf16.mxu0 0
        %395 = vmatpush1.bf16.msra.mxu0 0
        %396 = vmatprep.subr.bf16.mxu0 0
        %397 = vmatpush1.bf16.msra.mxu0 0
        %398 = vmatprep.subr.bf16.mxu0 0
        %399 = vmatpush1.bf16.msra.mxu0 0
        %400 = vmatprep.subr.bf16.mxu0 0
        %401 = vmatpush1.bf16.msra.mxu0 0
        %402 = vmatprep.subr.bf16.mxu0 0
        %403 = vmatpush1.bf16.msra.mxu0 0
        %404 = vmatprep.subr.bf16.mxu0 0
        %405 = vmatpush1.bf16.msra.mxu0 0
        %406 = vmatprep.subr.bf16.mxu0 0
        %407 = vmatpush1.bf16.msra.mxu0 0
        %408 = vmatprep.subr.bf16.mxu0 0
        %409 = vmatpush1.bf16.msra.mxu0 0
        %410 = vmatprep.subr.bf16.mxu0 0
        %411 = vmatpush1.bf16.msra.mxu0 0
        %412 = vmatprep.mubr.bf16.mxu0 0
        %413 = vmatmul.mubr.bf16.gmra.mrb[0].mxu0 %v378
        %v414 = vpop.f32.mrb[0].mxu0
        %v415 = vadd.f32 0.0, %v414
        %v416 = vpop.f32.mrb[0].mxu0
        %v417 = vpop.f32.mrb[0].mxu0
        %v418 = vpop.f32.mrb[0].mxu0
        %419 = vdwg.mxu0
        %v420 = vld [vmem:[%s318] sm:$0xf]
        %v421 = vld [vmem:[%s318 + $0x4] sm:$0xf]
        %v422 = vld [vmem:[%s318 + $0x8] sm:$0xf]
        %v423 = vld [vmem:[%s318 + $0xc] sm:$0xf]
        %v424 = vld [vmem:[%s318 + $0x10] sm:$0xf]
        %v425 = vld [vmem:[%s318 + $0x14] sm:$0xf]
        %v426 = vld [vmem:[%s318 + $0x18] sm:$0xf]
        %v427 = vld [vmem:[%s318 + $0x1c] sm:$0xf]
        %v436 = vunpack.c.l.b16 %v420
        %v437 = vunpack.c.l.b16 %v421
        %v438 = vunpack.c.l.b16 %v422
        %v439 = vunpack.c.l.b16 %v423
        %v440 = vunpack.c.l.b16 %v424
        %v441 = vunpack.c.l.b16 %v425
        %v442 = vunpack.c.l.b16 %v426
        %v443 = vunpack.c.l.b16 %v427
        %v444 = vpack.c.b16 %v437, %v436
        %v445 = vpack.c.b16 %v439, %v438
        %v446 = vpack.c.b16 %v441, %v440
        %v447 = vpack.c.b16 %v443, %v442
        %452 = vmatprep.subr.bf16.mxu0 0
        %453 = vmatpush1.bf16.msra.mxu0 %v444
        %454 = vmatprep.subr.bf16.mxu0 0
        %455 = vmatpush1.bf16.msra.mxu0 %v445
        %456 = vmatprep.subr.bf16.mxu0 0
        %457 = vmatpush1.bf16.msra.mxu0 %v446
        %458 = vmatprep.subr.bf16.mxu0 0
        %459 = vmatpush1.bf16.msra.mxu0 %v447
        %460 = vmatprep.subr.bf16.mxu0 0
        %461 = vmatpush1.bf16.msra.mxu0 0
        %462 = vmatprep.subr.bf16.mxu0 0
        %463 = vmatpush1.bf16.msra.mxu0 0
        %464 = vmatprep.subr.bf16.mxu0 0
        %465 = vmatpush1.bf16.msra.mxu0 0
        %466 = vmatprep.subr.bf16.mxu0 0
        %467 = vmatpush1.bf16.msra.mxu0 0
        %468 = vmatprep.subr.bf16.mxu0 0
        %469 = vmatpush1.bf16.msra.mxu0 0
        %470 = vmatprep.subr.bf16.mxu0 0
        %471 = vmatpush1.bf16.msra.mxu0 0
        %472 = vmatprep.subr.bf16.mxu0 0
        %473 = vmatpush1.bf16.msra.mxu0 0
        %474 = vmatprep.subr.bf16.mxu0 0
        %475 = vmatpush1.bf16.msra.mxu0 0
        %476 = vmatprep.subr.bf16.mxu0 0
        %477 = vmatpush1.bf16.msra.mxu0 0
        %478 = vmatprep.subr.bf16.mxu0 0
        %479 = vmatpush1.bf16.msra.mxu0 0
        %480 = vmatprep.subr.bf16.mxu0 0
        %481 = vmatpush1.bf16.msra.mxu0 0
        %482 = vmatprep.subr.bf16.mxu0 0
        %483 = vmatpush1.bf16.msra.mxu0 0
        %484 = vmatprep.mubr.bf16.mxu0 0
        %485 = vmatmul.mubr.bf16.gmra.mrb[0].mxu0 %v378
        %v486 = vpop.f32.mrb[0].mxu0
        %v487 = vadd.f32 0.0, %v486
        %v488 = vpop.f32.mrb[0].mxu0
        %v489 = vpop.f32.mrb[0].mxu0
        %v490 = vpop.f32.mrb[0].mxu0
        %491 = vdwg.mxu0
        %v492 = vxor.u32 %v415, 2147483648
        %v493 = vmul.f32 %v492, 1.442695
        %v494 = vpow.pop %v493
        %v495 = vadd.f32 %v494, 1.0
        %v496 = vrcp.pop %v495
        %v497 = vmul.f32 1.0, %v496
        %v498 = vmul.f32 %v415, %v497
        %v499 = vmul.f32 %v498, %v487
        %v500 = vpack.c.bf16 %v499, %v499
        %v501 = vld [vmem:[%s329] sm:$0xf]
        %v502 = vld [vmem:[%s329 + $0x4] sm:$0xf]
        %v503 = vld [vmem:[%s329 + $0x8] sm:$0xf]
        %v504 = vld [vmem:[%s329 + $0xc] sm:$0xf]
        %v509 = vunpack.c.l.b16 %v501
        %v510 = vunpack.c.l.b16 %v502
        %v511 = vunpack.c.l.b16 %v503
        %v512 = vunpack.c.l.b16 %v504
        %v513 = vpack.c.b16 %v510, %v509
        %v514 = vpack.c.b16 %v512, %v511
        %vm517 = vcmask 261120
        %v519 = vsel %vm517, %v500, 0
        %521 = vmatprep.subr.bf16.mxu0 0
        %522 = vmatpush1.bf16.msra.mxu0 %v513
        %523 = vmatprep.subr.bf16.mxu0 0
        %524 = vmatpush1.bf16.msra.mxu0 %v514
        %525 = vmatprep.subr.bf16.mxu0 0
        %526 = vmatpush1.bf16.msra.mxu0 0
        %527 = vmatprep.subr.bf16.mxu0 0
        %528 = vmatpush1.bf16.msra.mxu0 0
        %529 = vmatprep.subr.bf16.mxu0 0
        %530 = vmatpush1.bf16.msra.mxu0 0
        %531 = vmatprep.subr.bf16.mxu0 0
        %532 = vmatpush1.bf16.msra.mxu0 0
        %533 = vmatprep.subr.bf16.mxu0 0
        %534 = vmatpush1.bf16.msra.mxu0 0
        %535 = vmatprep.subr.bf16.mxu0 0
        %536 = vmatpush1.bf16.msra.mxu0 0
        %537 = vmatprep.subr.bf16.mxu0 0
        %538 = vmatpush1.bf16.msra.mxu0 0
        %539 = vmatprep.subr.bf16.mxu0 0
        %540 = vmatpush1.bf16.msra.mxu0 0
        %541 = vmatprep.subr.bf16.mxu0 0
        %542 = vmatpush1.bf16.msra.mxu0 0
        %543 = vmatprep.subr.bf16.mxu0 0
        %544 = vmatpush1.bf16.msra.mxu0 0
        %545 = vmatprep.subr.bf16.mxu0 0
        %546 = vmatpush1.bf16.msra.mxu0 0
        %547 = vmatprep.subr.bf16.mxu0 0
        %548 = vmatpush1.bf16.msra.mxu0 0
        %549 = vmatprep.subr.bf16.mxu0 0
        %550 = vmatpush1.bf16.msra.mxu0 0
        %551 = vmatprep.subr.bf16.mxu0 0
        %552 = vmatpush1.bf16.msra.mxu0 0
        %553 = vmatprep.mubr.bf16.mxu0 0
        %554 = vmatmul.mubr.bf16.gmra.mrb[0].mxu0 %v519
        %v555 = vpop.f32.mrb[0].mxu0
        %v556 = vadd.f32 0.0, %v555
        %v557 = vpop.f32.mrb[0].mxu0
        %v558 = vpop.f32.mrb[0].mxu0
        %v559 = vpop.f32.mrb[0].mxu0
        %560 = vdwg.mxu0
        // Predicated region
        $region41: #{moe_forward.4} parent=39 // pred_check
          %p561 = pneg %p337
        $region42: #{moe_forward.4} parent=39 // pred_check_branch
          %563 = sbr.rel (%p561) target = $region44
        $region43: #{moe_forward.4} parent=39 // pred_region
          %564 = vst.msk [vmem:[#allocation2] sm:$0xff] %vm376, %v556
        $region44: #{moe_forward.4} parent=39 // pred_fallthru
          _
        %p565 = scmp.gt.s32.totalorder %s32, 0
        // Predicated region
        $region45: #{moe_forward.4} parent=39 // pred_check
          %p566 = pneg %p565
        $region46: #{moe_forward.4} parent=39 // pred_check_branch
          %568 = sbr.rel (%p566) target = $region48
        $region47: #{moe_forward.4} parent=39 // pred_region
          %v569 = vld [vmem:[#allocation2] sm:$0xff]
          %v570 = vadd.f32 %v569, %v556
          %571 = vst.msk [vmem:[#allocation2] sm:$0xff] %vm376, %v570
        $region48: #{moe_forward.4} parent=39 // pred_fallthru
          _
      $region40: #{moe_forward.4} parent=35 // pred_fallthru
        _
      // Predicated region
      $region49: #{moe_forward.4} parent=35 // pred_check
        %p572 = pneg %p337
      $region50: #{moe_forward.4} parent=35 // pred_check_branch
        %574 = sbr.rel (%p572) target = $region52
      $region51: #{moe_forward.4} parent=35 // pred_region
        // Predicated region
        $region53: #{moe_forward.4} parent=51 // pred_check
          %p575 = pneg %p339
        $region54: #{moe_forward.4} parent=51 // pred_check_branch
          %577 = sbr.rel (%p575) target = $region56
        $region55: #{moe_forward.4} parent=51 // pred_region
          %v578 = vld [vmem:[#allocation2] sm:$0xff]
          %v579 = vpack.c.bf16 %v578, %v578
          %vm580 = vcmask 519168
          %581 = vst.msk [vmem:[%s335] sm:$0xf] %vm580, %v579
        $region56: #{moe_forward.4} parent=51 // pred_fallthru
          _
        %p582 = scmp.eq.s32.totalorder %s338, 0
        // Predicated region
        $region57: #{moe_forward.4} parent=51 // pred_check
          %p583 = pneg %p582
        $region58: #{moe_forward.4} parent=51 // pred_check_branch
          %585 = sbr.rel (%p583) target = $region60
        $region59: #{moe_forward.4} parent=51 // pred_region
          %vm586 = vcmask 519168
          %587 = vst.msk [vmem:[%s335] sm:$0xf] %vm586, 0
        $region60: #{moe_forward.4} parent=51 // pred_fallthru
          _
      $region52: #{moe_forward.4} parent=35 // pred_fallthru
        _
      %p588 = scmp.lt.s32.totalorder %s31, 14
      %s589 = scalar_select %p588, %s31, 14
      %s590 = smul.addr %s589, 4
      %s591 = scalar_lea.vmem %s6, %s590
      // Predicated region
      $region61: #{moe_forward.4} parent=35 // pred_check
        %p592 = pneg %p173
      $region62: #{moe_forward.4} parent=35 // pred_check_branch
        %594 = sbr.rel (%p592) target = $region64
      $region63: #{moe_forward.4} parent=35 // pred_region
        _
      $region64: #{moe_forward.4} parent=35 // pred_fallthru
        _
    $region36: #{moe_forward.4} parent=5 // pred_fallthru
      _
    %p595 = scmp.le.s32.totalorder 2, %s22
    // Predicated region
    $region65: #{moe_forward.4} parent=5 // pred_check
      %p596 = pneg %p595
    $region66: #{moe_forward.4} parent=5 // pred_check_branch
      %598 = sbr.rel (%p596) target = $region68
    $region67: #{moe_forward.4} parent=5 // pred_region
      %s599 = ssub.s32 %s22, 2
      // Predicated region
      $region69: #{moe_forward.4} parent=67 // pred_check
        %p600 = pneg %p179
      $region70: #{moe_forward.4} parent=67 // pred_check_branch
        %602 = sbr.rel (%p600) target = $region72
      $region71: #{moe_forward.4} parent=67 // pred_region
        %p603 = scmp.lt.s32.totalorder %s33, 14
        %s604 = scalar_select %p603, %s33, 14
        %s605 = smul.addr %s604, 4
        %s606 = scalar_lea.vmem %s6, %s605
      $region72: #{moe_forward.4} parent=67 // pred_fallthru
        _
    $region68: #{moe_forward.4} parent=5 // pred_fallthru
      _
  $region6: #{moe_forward.4} parent=0 // loop_footer
    %s26 = sadd.s32 1, %s22
  $region7: #{moe_forward.4} parent=0 // loop_footer_branch
    %21 = sbr.rel target = $region3
  $region8: #{moe_forward.4} parent=0 // loop_exit
    _

</llo_original>
